<compile_context>
chip_gen: v5e
topology: v5e:2x2
jax: 0.10.0
libtpu: 0.0.40
codegen_flags: <defaults>
</compile_context>

<pallas_src>
import functools

import jax
import jax.numpy as jnp
from jax.experimental import pallas as pl
from jax.experimental.pallas import tpu as pltpu

# name -> (input_range multiplier == lookback L, forecast horizon H)
BASIS_SPECS = {
    'australian_electricity_demand_dataset': (420, 336),
    'bitcoin_dataset_without_missing_values': (9, 30),
    'car_parts_dataset_without_missing_values': (15, 12),
    'covid_deaths_dataset': (9, 30),
    'electricity_hourly_dataset': (30, 168),
    'electricity_weekly_dataset': (65, 8),
    'fred_md_dataset': (15, 12),
    'hospital_dataset': (15, 12),
    'kaggle_web_traffic_weekly_dataset': (10, 8),
    'kdd_cup_2018_dataset_without_missing_values': (210, 168),
    'm1_monthly_dataset': (15, 18),
    'm1_quarterly_dataset': (5, 8),
    'm1_yearly_dataset': (2, 6),
    'm3_monthly_dataset': (15, 18),
    'm3_quarterly_dataset': (5, 8),
    'm3_yearly_dataset': (2, 6),
    'm4_daily_dataset': (9, 14),
    'm4_hourly_dataset': (210, 48),
    'm4_monthly_dataset': (15, 18),
    'm4_quarterly_dataset': (5, 8),
    'm4_weekly_dataset': (65, 13),
    'nn5_daily_dataset_without_missing_values': (9, 56),
    'nn5_weekly_dataset': (65, 8),
    'pedestrian_counts_dataset': (210, 24),
    'rideshare_dataset_without_missing_values': (210, 168),
    'saugeenday_dataset': (9, 30),
    'solar_weekly_dataset': (6, 5),
    'sunspot_dataset_without_missing_values': (9, 30),
    'temperature_rain_dataset_without_missing_values': (9, 30),
    'tourism_monthly_dataset': (15, 24),
    'tourism_quarterly_dataset': (5, 8),
    'tourism_yearly_dataset': (2, 4),
    'traffic_hourly_dataset': (30, 168),
    'traffic_weekly_dataset': (65, 8),
    'us_births_dataset': (9, 30),
    'vehicle_trips_dataset_without_missing_values': (9, 30),
}


def _round_up(v, m):
    return ((v + m - 1) // m) * m


# ----------------------------- Pallas kernel -----------------------------

def nlinear_kernel(x_ref, w1_ref, b1_ref, wr_ref, br_ref, wt_ref, bl_ref, o_ref,
                   *, L, C, layers, mm_dtype):
    """One batch tile, batch on lanes.

    x_ref : (L, Bt)      f32 VMEM   time on sublanes, batch on lanes
    w1_ref: (3*C,)       f32 SMEM   first conv weights, idx = k*C + c_out
    b1_ref: (C,)         f32 SMEM
    wr_ref: ((layers-1)*3*C*C,) f32 SMEM  idx = ((li*3+k)*C + c_out)*C + c_in
    br_ref: ((layers-1)*C or 1,) f32 SMEM idx = li*C + c_out
    wt_ref: (Hp, C*L)    mm_dtype VMEM, resident across the grid
    bl_ref: (Hp, 1)      f32 VMEM, resident across the grid
    o_ref : (Hp, Bt)     f32 VMEM
    """
    x = x_ref[...]                         # (L, Bt)
    bt = x.shape[1]
    last = x[L - 1:L, :]                   # (1, Bt)  last value of the raw input
    h0 = x - last                          # (L, Bt)

    zrow = jnp.zeros((1, bt), jnp.float32)     # hoisted, reused for all taps

    # TODO(synk): move tap shifts to pltpu.roll(+iota mask) on the sublane axis
    # once non-8-aligned sublane roll is confirmed on the target toolchain.
    def tap_prev(a):   # conv tap k=0: a[t-1], zero at t == 0 ('same' pad)
        return jnp.concatenate([zrow, a[:L - 1, :]], axis=0)

    def tap_next(a):   # conv tap k=2: a[t+1], zero at t == L-1
        return jnp.concatenate([a[1:, :], zrow], axis=0)

    # ---- conv 1: Conv1d(1, C, 3, padding='same') + ReLU --------------------
    # c_in == 1: channel mix is 3 scalar(SMEM) x vector(VPU) MACs per channel.
    p0, n0 = tap_prev(h0), tap_next(h0)
    act = []
    for co in range(C):
        z = (w1_ref[0 * C + co] * p0
             + w1_ref[1 * C + co] * h0
             + w1_ref[2 * C + co] * n0
             + b1_ref[co])
        act.append(jnp.maximum(z, 0.0))

    # ---- convs 2..layers: Conv1d(C, C, 3, padding='same') + ReLU -----------
    # ci-outer / co-inner with C running accumulators: taps for one input
    # channel are built on the fly, keeping peak live slabs ~C+3 (not 3C).
    for li in range(layers - 1):
        accs = [None] * C
        for ci in range(C):
            a = act[ci]
            p = tap_prev(a)
            n = tap_next(a)
            for co in range(C):
                contrib = (wr_ref[((li * 3 + 0) * C + co) * C + ci] * p
                           + wr_ref[((li * 3 + 1) * C + co) * C + ci] * a
                           + wr_ref[((li * 3 + 2) * C + co) * C + ci] * n)
                accs[co] = contrib if accs[co] is None else accs[co] + contrib
        act = [jnp.maximum(accs[co] + br_ref[li * C + co], 0.0)
               for co in range(C)]

    # ---- per-dataset linear: one fused K = C*L MXU dot, f32 accumulation ---
    # Row j = co*L + l of the stack matches torch's flatten order, and wt is
    # pre-packed as (Hp, C*L), so no in-kernel relayout of weights is needed.
    act_stack = jnp.concatenate(act, axis=0).astype(mm_dtype)    # (C*L, Bt)
    acc = jnp.dot(wt_ref[...], act_stack,
                  preferred_element_type=jnp.float32)            # (Hp, Bt)

    # final_forecast = basis_parameters + last_input (broadcast over horizon)
    o_ref[...] = acc + bl_ref[...] + last


# --------------------------- one-time weight packing ---------------------------

def pack_nlinear(params, dataset_name, mm_dtype=jnp.bfloat16):
    """Pre-pack all weights for the kernel (runs once, off the forward path)."""
    C = params['w1'].shape[0]
    layers = params['wr'].shape[0] + 1
    W, b_lin = params['linears'][dataset_name]
    H = W.shape[0]
    L = W.shape[1] // C
    assert W.shape[1] == C * L

    hp = _round_up(H, 8)      # sublane alignment only (lanes carry the batch)

    # Conv weights / biases -> flat f32 scalar tables, read from SMEM in-kernel.
    w1f = jnp.transpose(params['w1'][:, 0, :], (1, 0)).reshape(-1)     # k*C + co
    b1f = params['b1'].astype(jnp.float32).reshape(-1)
    if layers > 1:
        # order (li, k, c_out, c_in): flat idx ((li*3 + k)*C + co)*C + ci
        wrf = jnp.transpose(params['wr'], (0, 3, 1, 2)).reshape(-1)
        brf = params['br'].astype(jnp.float32).reshape(-1)             # li*C + co
    else:   # guard: single-conv configuration
        wrf = jnp.zeros((1,), jnp.float32)
        brf = jnp.zeros((1,), jnp.float32)

    # Per-dataset linear: torch (H, C*L) -> (Hp, C*L) zero-padded, mm_dtype.
    wt = jnp.zeros((hp, C * L), jnp.float32).at[:H].set(
        W.astype(jnp.float32)).astype(mm_dtype)
    bl = jnp.zeros((hp, 1), jnp.float32).at[:H, 0].set(b_lin.astype(jnp.float32))

    return {'w1f': w1f, 'b1f': b1f, 'wrf': wrf, 'brf': brf,
            'wt': wt, 'bl': bl,
            'L': L, 'H': H, 'hp': hp, 'C': C, 'layers': layers,
            'mm_dtype': mm_dtype}


# ------------------------------ forward wrapper ------------------------------

def _pick_batch_tile(B, L, b_tile):
    """Batch tile: lane-dense (multiple of 128), smaller for long lookbacks,
    and (when the batch allows) >= 2 grid steps for the v7x megacore."""
    b_ceil = _round_up(max(B, 1), 128)
    if L >= 384:
        cap = 128
    elif L >= 192:
        cap = 256
    else:
        cap = max(128, _round_up(b_tile, 128))
    if b_ceil >= 2 * 128:
        cap = min(cap, max(128, _round_up(pl.cdiv(B, 2), 128)))
    return max(128, min(cap, b_ceil))


def nlinear_forward(packed, x, *, b_tile=256):
    """NLinear forward using pre-packed weights from pack_nlinear()."""
    L, H, hp = packed['L'], packed['H'], packed['hp']
    C, layers = packed['C'], packed['layers']
    mm_dtype = packed['mm_dtype']
    B, Lx = x.shape
    assert Lx == L, "input length must match the chosen basis linear"

    bt = _pick_batch_tile(B, L, b_tile)
    b_pad = _round_up(B, bt)
    nb = b_pad // bt

    # Transposed layout: time on sublanes, (padded) batch on lanes.
    x_t = jnp.zeros((L, b_pad), jnp.float32).at[:, :B].set(
        x.astype(jnp.float32).T)

    kern = functools.partial(nlinear_kernel, L=L, C=C, layers=layers,
                             mm_dtype=mm_dtype)

    itemsize = jnp.dtype(mm_dtype).itemsize
    flops = (2 * 3 * C * b_pad * L                         # first conv
             + (layers - 1) * 2 * 3 * C * C * b_pad * L    # remaining convs
             + 2 * b_pad * (C * L) * hp)                   # fused final linear
    bytes_accessed = (x_t.size * 4
                      + packed['w1f'].size * 4 + packed['b1f'].size * 4
                      + packed['wrf'].size * 4 + packed['brf'].size * 4
                      + hp * C * L * itemsize + hp * 4
                      + hp * b_pad * 4)

    # VMEM budget: double-buffered x/out tiles + resident (double-counted)
    # weights + live activation slabs + the stacked matmul operand, 2x headroom,
    # capped below the physical per-core VMEM (64 MiB on v7x).
    act_bytes = (2 * C + 6) * L * bt * 4 + C * L * bt * (4 + itemsize)
    vmem_need = (2 * L * bt * 4 + 2 * hp * bt * 4
                 + 2 * hp * C * L * itemsize + 2 * hp * 4 + act_bytes)
    try:
        phys = int(pltpu.get_tpu_info().vmem_capacity_bytes)
    except Exception:
        phys = 64 * 2 ** 20          # conservative (v7x per-TC) fallback
    vmem_limit = int(min(phys * 7 // 8, max(24 * 2 ** 20, 2 * vmem_need)))

    smem = pl.BlockSpec(memory_space=pltpu.MemorySpace.SMEM)
    out = pl.pallas_call(
        kern,
        out_shape=jax.ShapeDtypeStruct((hp, b_pad), jnp.float32),
        grid=(nb,),
        in_specs=[
            pl.BlockSpec((L, bt), lambda i: (0, i)),        # x: batch-tiled
            smem, smem, smem, smem,                          # conv scalars
            pl.BlockSpec((hp, C * L), lambda i: (0, 0)),     # wt: resident
            pl.BlockSpec((hp, 1), lambda i: (0, 0)),         # lin bias: resident
        ],
        out_specs=pl.BlockSpec((hp, bt), lambda i: (0, i)),
        compiler_params=pltpu.CompilerParams(
            dimension_semantics=("parallel",),
            vmem_limit_bytes=vmem_limit),
        cost_estimate=pl.CostEstimate(flops=flops, transcendentals=0,
                                      bytes_accessed=bytes_accessed),
    )(x_t, packed['w1f'], packed['b1f'], packed['wrf'], packed['brf'],
      packed['wt'], packed['bl'])

    return out[:H, :B].T


# ------------------------- pure-JAX reference (NCW) -------------------------

def nlinear_ref(params, x, dataset_name):
    xi = x[:, None, :]                         # (B, 1, L)
    last = xi[:, :, -1:]                       # (B, 1, 1)
    h = xi - last
    n_rest = params['wr'].shape[0]
    conv_w = [params['w1']] + [params['wr'][i] for i in range(n_rest)]
    conv_b = [params['b1']] + [params['br'][i] for i in range(n_rest)]
    for w, b in zip(conv_w, conv_b):
        h = jax.lax.conv_general_dilated(
            h, w, window_strides=(1,), padding='SAME',
            dimension_numbers=('NCH', 'OIH', 'NCH'))
        h = jnp.maximum(h + b[None, :, None], 0.0)
    flat = h.reshape(h.shape[0], -1)
    W, bl = params['linears'][dataset_name]
    basis = flat @ W.T + bl[None, :]
    return basis + last[:, 0, :]


# -------------------------------- parameters --------------------------------

def init_params(key, layer_size, layers):
    C = layer_size
    keys = jax.random.split(key, 4 + 2 * len(BASIS_SPECS))
    w1 = 0.3 * jax.random.normal(keys[0], (C, 1, 3), jnp.float32)
    b1 = 0.1 * jax.random.normal(keys[1], (C,), jnp.float32)
    wr = 0.3 * jax.random.normal(keys[2], (layers - 1, C, C, 3), jnp.float32)
    br = 0.1 * jax.random.normal(keys[3], (layers - 1, C), jnp.float32)
    linears = {}
    for i, name in enumerate(sorted(BASIS_SPECS)):
        mult, out = BASIS_SPECS[name]
        fan_in = C * mult
        kw, kb = keys[4 + 2 * i], keys[5 + 2 * i]
        W = (float(fan_in) ** -0.5) * jax.random.normal(kw, (out, fan_in), jnp.float32)
        b = 0.1 * jax.random.normal(kb, (out,), jnp.float32)
        linears[name] = (W, b)
    return {'w1': w1, 'b1': b1, 'wr': wr, 'br': br, 'linears': linears}


if __name__ == "__main__":
    layer_size = 8        # conv channels C
    layers = 2            # 1 first conv + 1 additional conv
    dataset_name = 'm1_monthly_dataset'
    L, H = BASIS_SPECS[dataset_name]   # lookback = 15, horizon = 18
    B = 2

    key = jax.random.PRNGKey(0)
    k_params, k_x = jax.random.split(key)
    params = init_params(k_params, layer_size, layers)
    x = jax.random.normal(k_x, (B, L), jnp.float32)

    # Weights are packed once, off the inference path (per the review).
    packed_bf16 = pack_nlinear(params, dataset_name, mm_dtype=jnp.bfloat16)
    packed_f32 = pack_nlinear(params, dataset_name, mm_dtype=jnp.float32)

    out_bf16 = jax.block_until_ready(nlinear_forward(packed_bf16, x))
    out_f32 = jax.block_until_ready(nlinear_forward(packed_f32, x))

    ref = nlinear_ref(params, x, dataset_name)
    assert out_bf16.shape == (B, H), out_bf16.shape
    assert out_f32.shape == (B, H), out_f32.shape

    if not jnp.allclose(out_f32, ref, atol=1e-4, rtol=1e-3):
        raise AssertionError(
            f"f32 kernel/reference mismatch: max abs err "
            f"{jnp.max(jnp.abs(out_f32 - ref))}")
    # bf16 MXU path on the final linear -> loosened tolerance vs f32 reference.
    if not jnp.allclose(out_bf16, ref, atol=3e-2, rtol=3e-2):
        raise AssertionError(
            f"bf16 kernel/reference mismatch: max abs err "
            f"{jnp.max(jnp.abs(out_bf16 - ref))}")
    print("KERNEL_OK")
</pallas_src>

<mosaic_0001>
module attributes {stable_mosaic.version = 11 : i64} {
  func.func @nlinear_kernel(%arg0: i32, %arg1: memref<15x128xf32, #tpu.memory_space<vmem>>, %arg2: memref<24xf32, #tpu.memory_space<smem>>, %arg3: memref<8xf32, #tpu.memory_space<smem>>, %arg4: memref<192xf32, #tpu.memory_space<smem>>, %arg5: memref<8xf32, #tpu.memory_space<smem>>, %arg6: memref<24x120xbf16, #tpu.memory_space<vmem>>, %arg7: memref<24x1xf32, #tpu.memory_space<vmem>>, %arg8: memref<24x128xf32, #tpu.memory_space<vmem>>) attributes {dimension_semantics = [#tpu.dimension_semantics<parallel>], iteration_bounds = array<i64: 1>, scalar_prefetch = 0 : i64, scratch_operands = 0 : i64, tpu.core_type = #tpu.core_type<tc>, window_params = [{transform_indices = @transform_0, window_bounds = array<i64: 15, 128>}, {transform_indices = @transform_1, window_bounds = array<i64: 24>}, {transform_indices = @transform_2, window_bounds = array<i64: 8>}, {transform_indices = @transform_3, window_bounds = array<i64: 192>}, {transform_indices = @transform_4, window_bounds = array<i64: 8>}, {pipeline_mode = #tpu.pipeline_mode<synchronous>, transform_indices = @transform_5, window_bounds = array<i64: 24, 120>}, {pipeline_mode = #tpu.pipeline_mode<synchronous>, transform_indices = @transform_6, window_bounds = array<i64: 24, 1>}, {transform_indices = @transform_7, window_bounds = array<i64: 24, 128>}]} {
    %c0 = arith.constant 0 : index
    %c0_0 = arith.constant 0 : index
    %0 = vector.load %arg1[%c0, %c0_0] : memref<15x128xf32, #tpu.memory_space<vmem>>, vector<15x128xf32>
    %1 = vector.extract_strided_slice %0 {offsets = [14, 0], sizes = [1, 128], strides = [1, 1]} : vector<15x128xf32> to vector<1x128xf32>
    %2 = vector.broadcast %1 : vector<1x128xf32> to vector<15x128xf32>
    %3 = arith.subf %0, %2 : vector<15x128xf32>
    %cst = arith.constant 0.000000e+00 : f32
    %4 = vector.broadcast %cst : f32 to vector<1x128xf32>
    %5 = vector.extract_strided_slice %3 {offsets = [0, 0], sizes = [14, 128], strides = [1, 1]} : vector<15x128xf32> to vector<14x128xf32>
    %6 = tpu.concatenate %4, %5 in 0 : vector<1x128xf32>, vector<14x128xf32> -> vector<15x128xf32>
    %7 = vector.extract_strided_slice %3 {offsets = [1, 0], sizes = [14, 128], strides = [1, 1]} : vector<15x128xf32> to vector<14x128xf32>
    %8 = tpu.concatenate %7, %4 in 0 : vector<14x128xf32>, vector<1x128xf32> -> vector<15x128xf32>
    %c0_1 = arith.constant 0 : index
    %9 = memref.load %arg2[%c0_1] : memref<24xf32, #tpu.memory_space<smem>>
    %10 = vector.broadcast %9 : f32 to vector<15x128xf32>
    %11 = arith.mulf %10, %6 : vector<15x128xf32>
    %c8 = arith.constant 8 : index
    %12 = memref.load %arg2[%c8] : memref<24xf32, #tpu.memory_space<smem>>
    %13 = vector.broadcast %12 : f32 to vector<15x128xf32>
    %14 = arith.mulf %13, %3 : vector<15x128xf32>
    %15 = arith.addf %11, %14 : vector<15x128xf32>
    %c16 = arith.constant 16 : index
    %16 = memref.load %arg2[%c16] : memref<24xf32, #tpu.memory_space<smem>>
    %17 = vector.broadcast %16 : f32 to vector<15x128xf32>
    %18 = arith.mulf %17, %8 : vector<15x128xf32>
    %19 = arith.addf %15, %18 : vector<15x128xf32>
    %c0_2 = arith.constant 0 : index
    %20 = memref.load %arg3[%c0_2] : memref<8xf32, #tpu.memory_space<smem>>
    %21 = vector.broadcast %20 : f32 to vector<15x128xf32>
    %22 = arith.addf %19, %21 : vector<15x128xf32>
    %cst_3 = arith.constant 0.000000e+00 : f32
    %23 = vector.broadcast %cst_3 : f32 to vector<15x128xf32>
    %24 = arith.maximumf %22, %23 : vector<15x128xf32>
    %c1 = arith.constant 1 : index
    %25 = memref.load %arg2[%c1] : memref<24xf32, #tpu.memory_space<smem>>
    %26 = vector.broadcast %25 : f32 to vector<15x128xf32>
    %27 = arith.mulf %26, %6 : vector<15x128xf32>
    %c9 = arith.constant 9 : index
    %28 = memref.load %arg2[%c9] : memref<24xf32, #tpu.memory_space<smem>>
    %29 = vector.broadcast %28 : f32 to vector<15x128xf32>
    %30 = arith.mulf %29, %3 : vector<15x128xf32>
    %31 = arith.addf %27, %30 : vector<15x128xf32>
    %c17 = arith.constant 17 : index
    %32 = memref.load %arg2[%c17] : memref<24xf32, #tpu.memory_space<smem>>
    %33 = vector.broadcast %32 : f32 to vector<15x128xf32>
    %34 = arith.mulf %33, %8 : vector<15x128xf32>
    %35 = arith.addf %31, %34 : vector<15x128xf32>
    %c1_4 = arith.constant 1 : index
    %36 = memref.load %arg3[%c1_4] : memref<8xf32, #tpu.memory_space<smem>>
    %37 = vector.broadcast %36 : f32 to vector<15x128xf32>
    %38 = arith.addf %35, %37 : vector<15x128xf32>
    %cst_5 = arith.constant 0.000000e+00 : f32
    %39 = vector.broadcast %cst_5 : f32 to vector<15x128xf32>
    %40 = arith.maximumf %38, %39 : vector<15x128xf32>
    %c2 = arith.constant 2 : index
    %41 = memref.load %arg2[%c2] : memref<24xf32, #tpu.memory_space<smem>>
    %42 = vector.broadcast %41 : f32 to vector<15x128xf32>
    %43 = arith.mulf %42, %6 : vector<15x128xf32>
    %c10 = arith.constant 10 : index
    %44 = memref.load %arg2[%c10] : memref<24xf32, #tpu.memory_space<smem>>
    %45 = vector.broadcast %44 : f32 to vector<15x128xf32>
    %46 = arith.mulf %45, %3 : vector<15x128xf32>
    %47 = arith.addf %43, %46 : vector<15x128xf32>
    %c18 = arith.constant 18 : index
    %48 = memref.load %arg2[%c18] : memref<24xf32, #tpu.memory_space<smem>>
    %49 = vector.broadcast %48 : f32 to vector<15x128xf32>
    %50 = arith.mulf %49, %8 : vector<15x128xf32>
    %51 = arith.addf %47, %50 : vector<15x128xf32>
    %c2_6 = arith.constant 2 : index
    %52 = memref.load %arg3[%c2_6] : memref<8xf32, #tpu.memory_space<smem>>
    %53 = vector.broadcast %52 : f32 to vector<15x128xf32>
    %54 = arith.addf %51, %53 : vector<15x128xf32>
    %cst_7 = arith.constant 0.000000e+00 : f32
    %55 = vector.broadcast %cst_7 : f32 to vector<15x128xf32>
    %56 = arith.maximumf %54, %55 : vector<15x128xf32>
    %c3 = arith.constant 3 : index
    %57 = memref.load %arg2[%c3] : memref<24xf32, #tpu.memory_space<smem>>
    %58 = vector.broadcast %57 : f32 to vector<15x128xf32>
    %59 = arith.mulf %58, %6 : vector<15x128xf32>
    %c11 = arith.constant 11 : index
    %60 = memref.load %arg2[%c11] : memref<24xf32, #tpu.memory_space<smem>>
    %61 = vector.broadcast %60 : f32 to vector<15x128xf32>
    %62 = arith.mulf %61, %3 : vector<15x128xf32>
    %63 = arith.addf %59, %62 : vector<15x128xf32>
    %c19 = arith.constant 19 : index
    %64 = memref.load %arg2[%c19] : memref<24xf32, #tpu.memory_space<smem>>
    %65 = vector.broadcast %64 : f32 to vector<15x128xf32>
    %66 = arith.mulf %65, %8 : vector<15x128xf32>
    %67 = arith.addf %63, %66 : vector<15x128xf32>
    %c3_8 = arith.constant 3 : index
    %68 = memref.load %arg3[%c3_8] : memref<8xf32, #tpu.memory_space<smem>>
    %69 = vector.broadcast %68 : f32 to vector<15x128xf32>
    %70 = arith.addf %67, %69 : vector<15x128xf32>
    %cst_9 = arith.constant 0.000000e+00 : f32
    %71 = vector.broadcast %cst_9 : f32 to vector<15x128xf32>
    %72 = arith.maximumf %70, %71 : vector<15x128xf32>
    %c4 = arith.constant 4 : index
    %73 = memref.load %arg2[%c4] : memref<24xf32, #tpu.memory_space<smem>>
    %74 = vector.broadcast %73 : f32 to vector<15x128xf32>
    %75 = arith.mulf %74, %6 : vector<15x128xf32>
    %c12 = arith.constant 12 : index
    %76 = memref.load %arg2[%c12] : memref<24xf32, #tpu.memory_space<smem>>
    %77 = vector.broadcast %76 : f32 to vector<15x128xf32>
    %78 = arith.mulf %77, %3 : vector<15x128xf32>
    %79 = arith.addf %75, %78 : vector<15x128xf32>
    %c20 = arith.constant 20 : index
    %80 = memref.load %arg2[%c20] : memref<24xf32, #tpu.memory_space<smem>>
    %81 = vector.broadcast %80 : f32 to vector<15x128xf32>
    %82 = arith.mulf %81, %8 : vector<15x128xf32>
    %83 = arith.addf %79, %82 : vector<15x128xf32>
    %c4_10 = arith.constant 4 : index
    %84 = memref.load %arg3[%c4_10] : memref<8xf32, #tpu.memory_space<smem>>
    %85 = vector.broadcast %84 : f32 to vector<15x128xf32>
    %86 = arith.addf %83, %85 : vector<15x128xf32>
    %cst_11 = arith.constant 0.000000e+00 : f32
    %87 = vector.broadcast %cst_11 : f32 to vector<15x128xf32>
    %88 = arith.maximumf %86, %87 : vector<15x128xf32>
    %c5 = arith.constant 5 : index
    %89 = memref.load %arg2[%c5] : memref<24xf32, #tpu.memory_space<smem>>
    %90 = vector.broadcast %89 : f32 to vector<15x128xf32>
    %91 = arith.mulf %90, %6 : vector<15x128xf32>
    %c13 = arith.constant 13 : index
    %92 = memref.load %arg2[%c13] : memref<24xf32, #tpu.memory_space<smem>>
    %93 = vector.broadcast %92 : f32 to vector<15x128xf32>
    %94 = arith.mulf %93, %3 : vector<15x128xf32>
    %95 = arith.addf %91, %94 : vector<15x128xf32>
    %c21 = arith.constant 21 : index
    %96 = memref.load %arg2[%c21] : memref<24xf32, #tpu.memory_space<smem>>
    %97 = vector.broadcast %96 : f32 to vector<15x128xf32>
    %98 = arith.mulf %97, %8 : vector<15x128xf32>
    %99 = arith.addf %95, %98 : vector<15x128xf32>
    %c5_12 = arith.constant 5 : index
    %100 = memref.load %arg3[%c5_12] : memref<8xf32, #tpu.memory_space<smem>>
    %101 = vector.broadcast %100 : f32 to vector<15x128xf32>
    %102 = arith.addf %99, %101 : vector<15x128xf32>
    %cst_13 = arith.constant 0.000000e+00 : f32
    %103 = vector.broadcast %cst_13 : f32 to vector<15x128xf32>
    %104 = arith.maximumf %102, %103 : vector<15x128xf32>
    %c6 = arith.constant 6 : index
    %105 = memref.load %arg2[%c6] : memref<24xf32, #tpu.memory_space<smem>>
    %106 = vector.broadcast %105 : f32 to vector<15x128xf32>
    %107 = arith.mulf %106, %6 : vector<15x128xf32>
    %c14 = arith.constant 14 : index
    %108 = memref.load %arg2[%c14] : memref<24xf32, #tpu.memory_space<smem>>
    %109 = vector.broadcast %108 : f32 to vector<15x128xf32>
    %110 = arith.mulf %109, %3 : vector<15x128xf32>
    %111 = arith.addf %107, %110 : vector<15x128xf32>
    %c22 = arith.constant 22 : index
    %112 = memref.load %arg2[%c22] : memref<24xf32, #tpu.memory_space<smem>>
    %113 = vector.broadcast %112 : f32 to vector<15x128xf32>
    %114 = arith.mulf %113, %8 : vector<15x128xf32>
    %115 = arith.addf %111, %114 : vector<15x128xf32>
    %c6_14 = arith.constant 6 : index
    %116 = memref.load %arg3[%c6_14] : memref<8xf32, #tpu.memory_space<smem>>
    %117 = vector.broadcast %116 : f32 to vector<15x128xf32>
    %118 = arith.addf %115, %117 : vector<15x128xf32>
    %cst_15 = arith.constant 0.000000e+00 : f32
    %119 = vector.broadcast %cst_15 : f32 to vector<15x128xf32>
    %120 = arith.maximumf %118, %119 : vector<15x128xf32>
    %c7 = arith.constant 7 : index
    %121 = memref.load %arg2[%c7] : memref<24xf32, #tpu.memory_space<smem>>
    %122 = vector.broadcast %121 : f32 to vector<15x128xf32>
    %123 = arith.mulf %122, %6 : vector<15x128xf32>
    %c15 = arith.constant 15 : index
    %124 = memref.load %arg2[%c15] : memref<24xf32, #tpu.memory_space<smem>>
    %125 = vector.broadcast %124 : f32 to vector<15x128xf32>
    %126 = arith.mulf %125, %3 : vector<15x128xf32>
    %127 = arith.addf %123, %126 : vector<15x128xf32>
    %c23 = arith.constant 23 : index
    %128 = memref.load %arg2[%c23] : memref<24xf32, #tpu.memory_space<smem>>
    %129 = vector.broadcast %128 : f32 to vector<15x128xf32>
    %130 = arith.mulf %129, %8 : vector<15x128xf32>
    %131 = arith.addf %127, %130 : vector<15x128xf32>
    %c7_16 = arith.constant 7 : index
    %132 = memref.load %arg3[%c7_16] : memref<8xf32, #tpu.memory_space<smem>>
    %133 = vector.broadcast %132 : f32 to vector<15x128xf32>
    %134 = arith.addf %131, %133 : vector<15x128xf32>
    %cst_17 = arith.constant 0.000000e+00 : f32
    %135 = vector.broadcast %cst_17 : f32 to vector<15x128xf32>
    %136 = arith.maximumf %134, %135 : vector<15x128xf32>
    %137 = vector.extract_strided_slice %24 {offsets = [0, 0], sizes = [14, 128], strides = [1, 1]} : vector<15x128xf32> to vector<14x128xf32>
    %138 = tpu.concatenate %4, %137 in 0 : vector<1x128xf32>, vector<14x128xf32> -> vector<15x128xf32>
    %139 = vector.extract_strided_slice %24 {offsets = [1, 0], sizes = [14, 128], strides = [1, 1]} : vector<15x128xf32> to vector<14x128xf32>
    %140 = tpu.concatenate %139, %4 in 0 : vector<14x128xf32>, vector<1x128xf32> -> vector<15x128xf32>
    %c0_18 = arith.constant 0 : index
    %141 = memref.load %arg4[%c0_18] : memref<192xf32, #tpu.memory_space<smem>>
    %142 = vector.broadcast %141 : f32 to vector<15x128xf32>
    %143 = arith.mulf %142, %138 : vector<15x128xf32>
    %c64 = arith.constant 64 : index
    %144 = memref.load %arg4[%c64] : memref<192xf32, #tpu.memory_space<smem>>
    %145 = vector.broadcast %144 : f32 to vector<15x128xf32>
    %146 = arith.mulf %145, %24 : vector<15x128xf32>
    %147 = arith.addf %143, %146 : vector<15x128xf32>
    %c128 = arith.constant 128 : index
    %148 = memref.load %arg4[%c128] : memref<192xf32, #tpu.memory_space<smem>>
    %149 = vector.broadcast %148 : f32 to vector<15x128xf32>
    %150 = arith.mulf %149, %140 : vector<15x128xf32>
    %151 = arith.addf %147, %150 : vector<15x128xf32>
    %c8_19 = arith.constant 8 : index
    %152 = memref.load %arg4[%c8_19] : memref<192xf32, #tpu.memory_space<smem>>
    %153 = vector.broadcast %152 : f32 to vector<15x128xf32>
    %154 = arith.mulf %153, %138 : vector<15x128xf32>
    %c72 = arith.constant 72 : index
    %155 = memref.load %arg4[%c72] : memref<192xf32, #tpu.memory_space<smem>>
    %156 = vector.broadcast %155 : f32 to vector<15x128xf32>
    %157 = arith.mulf %156, %24 : vector<15x128xf32>
    %158 = arith.addf %154, %157 : vector<15x128xf32>
    %c136 = arith.constant 136 : index
    %159 = memref.load %arg4[%c136] : memref<192xf32, #tpu.memory_space<smem>>
    %160 = vector.broadcast %159 : f32 to vector<15x128xf32>
    %161 = arith.mulf %160, %140 : vector<15x128xf32>
    %162 = arith.addf %158, %161 : vector<15x128xf32>
    %c16_20 = arith.constant 16 : index
    %163 = memref.load %arg4[%c16_20] : memref<192xf32, #tpu.memory_space<smem>>
    %164 = vector.broadcast %163 : f32 to vector<15x128xf32>
    %165 = arith.mulf %164, %138 : vector<15x128xf32>
    %c80 = arith.constant 80 : index
    %166 = memref.load %arg4[%c80] : memref<192xf32, #tpu.memory_space<smem>>
    %167 = vector.broadcast %166 : f32 to vector<15x128xf32>
    %168 = arith.mulf %167, %24 : vector<15x128xf32>
    %169 = arith.addf %165, %168 : vector<15x128xf32>
    %c144 = arith.constant 144 : index
    %170 = memref.load %arg4[%c144] : memref<192xf32, #tpu.memory_space<smem>>
    %171 = vector.broadcast %170 : f32 to vector<15x128xf32>
    %172 = arith.mulf %171, %140 : vector<15x128xf32>
    %173 = arith.addf %169, %172 : vector<15x128xf32>
    %c24 = arith.constant 24 : index
    %174 = memref.load %arg4[%c24] : memref<192xf32, #tpu.memory_space<smem>>
    %175 = vector.broadcast %174 : f32 to vector<15x128xf32>
    %176 = arith.mulf %175, %138 : vector<15x128xf32>
    %c88 = arith.constant 88 : index
    %177 = memref.load %arg4[%c88] : memref<192xf32, #tpu.memory_space<smem>>
    %178 = vector.broadcast %177 : f32 to vector<15x128xf32>
    %179 = arith.mulf %178, %24 : vector<15x128xf32>
    %180 = arith.addf %176, %179 : vector<15x128xf32>
    %c152 = arith.constant 152 : index
    %181 = memref.load %arg4[%c152] : memref<192xf32, #tpu.memory_space<smem>>
    %182 = vector.broadcast %181 : f32 to vector<15x128xf32>
    %183 = arith.mulf %182, %140 : vector<15x128xf32>
    %184 = arith.addf %180, %183 : vector<15x128xf32>
    %c32 = arith.constant 32 : index
    %185 = memref.load %arg4[%c32] : memref<192xf32, #tpu.memory_space<smem>>
    %186 = vector.broadcast %185 : f32 to vector<15x128xf32>
    %187 = arith.mulf %186, %138 : vector<15x128xf32>
    %c96 = arith.constant 96 : index
    %188 = memref.load %arg4[%c96] : memref<192xf32, #tpu.memory_space<smem>>
    %189 = vector.broadcast %188 : f32 to vector<15x128xf32>
    %190 = arith.mulf %189, %24 : vector<15x128xf32>
    %191 = arith.addf %187, %190 : vector<15x128xf32>
    %c160 = arith.constant 160 : index
    %192 = memref.load %arg4[%c160] : memref<192xf32, #tpu.memory_space<smem>>
    %193 = vector.broadcast %192 : f32 to vector<15x128xf32>
    %194 = arith.mulf %193, %140 : vector<15x128xf32>
    %195 = arith.addf %191, %194 : vector<15x128xf32>
    %c40 = arith.constant 40 : index
    %196 = memref.load %arg4[%c40] : memref<192xf32, #tpu.memory_space<smem>>
    %197 = vector.broadcast %196 : f32 to vector<15x128xf32>
    %198 = arith.mulf %197, %138 : vector<15x128xf32>
    %c104 = arith.constant 104 : index
    %199 = memref.load %arg4[%c104] : memref<192xf32, #tpu.memory_space<smem>>
    %200 = vector.broadcast %199 : f32 to vector<15x128xf32>
    %201 = arith.mulf %200, %24 : vector<15x128xf32>
    %202 = arith.addf %198, %201 : vector<15x128xf32>
    %c168 = arith.constant 168 : index
    %203 = memref.load %arg4[%c168] : memref<192xf32, #tpu.memory_space<smem>>
    %204 = vector.broadcast %203 : f32 to vector<15x128xf32>
    %205 = arith.mulf %204, %140 : vector<15x128xf32>
    %206 = arith.addf %202, %205 : vector<15x128xf32>
    %c48 = arith.constant 48 : index
    %207 = memref.load %arg4[%c48] : memref<192xf32, #tpu.memory_space<smem>>
    %208 = vector.broadcast %207 : f32 to vector<15x128xf32>
    %209 = arith.mulf %208, %138 : vector<15x128xf32>
    %c112 = arith.constant 112 : index
    %210 = memref.load %arg4[%c112] : memref<192xf32, #tpu.memory_space<smem>>
    %211 = vector.broadcast %210 : f32 to vector<15x128xf32>
    %212 = arith.mulf %211, %24 : vector<15x128xf32>
    %213 = arith.addf %209, %212 : vector<15x128xf32>
    %c176 = arith.constant 176 : index
    %214 = memref.load %arg4[%c176] : memref<192xf32, #tpu.memory_space<smem>>
    %215 = vector.broadcast %214 : f32 to vector<15x128xf32>
    %216 = arith.mulf %215, %140 : vector<15x128xf32>
    %217 = arith.addf %213, %216 : vector<15x128xf32>
    %c56 = arith.constant 56 : index
    %218 = memref.load %arg4[%c56] : memref<192xf32, #tpu.memory_space<smem>>
    %219 = vector.broadcast %218 : f32 to vector<15x128xf32>
    %220 = arith.mulf %219, %138 : vector<15x128xf32>
    %c120 = arith.constant 120 : index
    %221 = memref.load %arg4[%c120] : memref<192xf32, #tpu.memory_space<smem>>
    %222 = vector.broadcast %221 : f32 to vector<15x128xf32>
    %223 = arith.mulf %222, %24 : vector<15x128xf32>
    %224 = arith.addf %220, %223 : vector<15x128xf32>
    %c184 = arith.constant 184 : index
    %225 = memref.load %arg4[%c184] : memref<192xf32, #tpu.memory_space<smem>>
    %226 = vector.broadcast %225 : f32 to vector<15x128xf32>
    %227 = arith.mulf %226, %140 : vector<15x128xf32>
    %228 = arith.addf %224, %227 : vector<15x128xf32>
    %229 = vector.extract_strided_slice %40 {offsets = [0, 0], sizes = [14, 128], strides = [1, 1]} : vector<15x128xf32> to vector<14x128xf32>
    %230 = tpu.concatenate %4, %229 in 0 : vector<1x128xf32>, vector<14x128xf32> -> vector<15x128xf32>
    %231 = vector.extract_strided_slice %40 {offsets = [1, 0], sizes = [14, 128], strides = [1, 1]} : vector<15x128xf32> to vector<14x128xf32>
    %232 = tpu.concatenate %231, %4 in 0 : vector<14x128xf32>, vector<1x128xf32> -> vector<15x128xf32>
    %c1_21 = arith.constant 1 : index
    %233 = memref.load %arg4[%c1_21] : memref<192xf32, #tpu.memory_space<smem>>
    %234 = vector.broadcast %233 : f32 to vector<15x128xf32>
    %235 = arith.mulf %234, %230 : vector<15x128xf32>
    %c65 = arith.constant 65 : index
    %236 = memref.load %arg4[%c65] : memref<192xf32, #tpu.memory_space<smem>>
    %237 = vector.broadcast %236 : f32 to vector<15x128xf32>
    %238 = arith.mulf %237, %40 : vector<15x128xf32>
    %239 = arith.addf %235, %238 : vector<15x128xf32>
    %c129 = arith.constant 129 : index
    %240 = memref.load %arg4[%c129] : memref<192xf32, #tpu.memory_space<smem>>
    %241 = vector.broadcast %240 : f32 to vector<15x128xf32>
    %242 = arith.mulf %241, %232 : vector<15x128xf32>
    %243 = arith.addf %239, %242 : vector<15x128xf32>
    %244 = arith.addf %151, %243 : vector<15x128xf32>
    %c9_22 = arith.constant 9 : index
    %245 = memref.load %arg4[%c9_22] : memref<192xf32, #tpu.memory_space<smem>>
    %246 = vector.broadcast %245 : f32 to vector<15x128xf32>
    %247 = arith.mulf %246, %230 : vector<15x128xf32>
    %c73 = arith.constant 73 : index
    %248 = memref.load %arg4[%c73] : memref<192xf32, #tpu.memory_space<smem>>
    %249 = vector.broadcast %248 : f32 to vector<15x128xf32>
    %250 = arith.mulf %249, %40 : vector<15x128xf32>
    %251 = arith.addf %247, %250 : vector<15x128xf32>
    %c137 = arith.constant 137 : index
    %252 = memref.load %arg4[%c137] : memref<192xf32, #tpu.memory_space<smem>>
    %253 = vector.broadcast %252 : f32 to vector<15x128xf32>
    %254 = arith.mulf %253, %232 : vector<15x128xf32>
    %255 = arith.addf %251, %254 : vector<15x128xf32>
    %256 = arith.addf %162, %255 : vector<15x128xf32>
    %c17_23 = arith.constant 17 : index
    %257 = memref.load %arg4[%c17_23] : memref<192xf32, #tpu.memory_space<smem>>
    %258 = vector.broadcast %257 : f32 to vector<15x128xf32>
    %259 = arith.mulf %258, %230 : vector<15x128xf32>
    %c81 = arith.constant 81 : index
    %260 = memref.load %arg4[%c81] : memref<192xf32, #tpu.memory_space<smem>>
    %261 = vector.broadcast %260 : f32 to vector<15x128xf32>
    %262 = arith.mulf %261, %40 : vector<15x128xf32>
    %263 = arith.addf %259, %262 : vector<15x128xf32>
    %c145 = arith.constant 145 : index
    %264 = memref.load %arg4[%c145] : memref<192xf32, #tpu.memory_space<smem>>
    %265 = vector.broadcast %264 : f32 to vector<15x128xf32>
    %266 = arith.mulf %265, %232 : vector<15x128xf32>
    %267 = arith.addf %263, %266 : vector<15x128xf32>
    %268 = arith.addf %173, %267 : vector<15x128xf32>
    %c25 = arith.constant 25 : index
    %269 = memref.load %arg4[%c25] : memref<192xf32, #tpu.memory_space<smem>>
    %270 = vector.broadcast %269 : f32 to vector<15x128xf32>
    %271 = arith.mulf %270, %230 : vector<15x128xf32>
    %c89 = arith.constant 89 : index
    %272 = memref.load %arg4[%c89] : memref<192xf32, #tpu.memory_space<smem>>
    %273 = vector.broadcast %272 : f32 to vector<15x128xf32>
    %274 = arith.mulf %273, %40 : vector<15x128xf32>
    %275 = arith.addf %271, %274 : vector<15x128xf32>
    %c153 = arith.constant 153 : index
    %276 = memref.load %arg4[%c153] : memref<192xf32, #tpu.memory_space<smem>>
    %277 = vector.broadcast %276 : f32 to vector<15x128xf32>
    %278 = arith.mulf %277, %232 : vector<15x128xf32>
    %279 = arith.addf %275, %278 : vector<15x128xf32>
    %280 = arith.addf %184, %279 : vector<15x128xf32>
    %c33 = arith.constant 33 : index
    %281 = memref.load %arg4[%c33] : memref<192xf32, #tpu.memory_space<smem>>
    %282 = vector.broadcast %281 : f32 to vector<15x128xf32>
    %283 = arith.mulf %282, %230 : vector<15x128xf32>
    %c97 = arith.constant 97 : index
    %284 = memref.load %arg4[%c97] : memref<192xf32, #tpu.memory_space<smem>>
    %285 = vector.broadcast %284 : f32 to vector<15x128xf32>
    %286 = arith.mulf %285, %40 : vector<15x128xf32>
    %287 = arith.addf %283, %286 : vector<15x128xf32>
    %c161 = arith.constant 161 : index
    %288 = memref.load %arg4[%c161] : memref<192xf32, #tpu.memory_space<smem>>
    %289 = vector.broadcast %288 : f32 to vector<15x128xf32>
    %290 = arith.mulf %289, %232 : vector<15x128xf32>
    %291 = arith.addf %287, %290 : vector<15x128xf32>
    %292 = arith.addf %195, %291 : vector<15x128xf32>
    %c41 = arith.constant 41 : index
    %293 = memref.load %arg4[%c41] : memref<192xf32, #tpu.memory_space<smem>>
    %294 = vector.broadcast %293 : f32 to vector<15x128xf32>
    %295 = arith.mulf %294, %230 : vector<15x128xf32>
    %c105 = arith.constant 105 : index
    %296 = memref.load %arg4[%c105] : memref<192xf32, #tpu.memory_space<smem>>
    %297 = vector.broadcast %296 : f32 to vector<15x128xf32>
    %298 = arith.mulf %297, %40 : vector<15x128xf32>
    %299 = arith.addf %295, %298 : vector<15x128xf32>
    %c169 = arith.constant 169 : index
    %300 = memref.load %arg4[%c169] : memref<192xf32, #tpu.memory_space<smem>>
    %301 = vector.broadcast %300 : f32 to vector<15x128xf32>
    %302 = arith.mulf %301, %232 : vector<15x128xf32>
    %303 = arith.addf %299, %302 : vector<15x128xf32>
    %304 = arith.addf %206, %303 : vector<15x128xf32>
    %c49 = arith.constant 49 : index
    %305 = memref.load %arg4[%c49] : memref<192xf32, #tpu.memory_space<smem>>
    %306 = vector.broadcast %305 : f32 to vector<15x128xf32>
    %307 = arith.mulf %306, %230 : vector<15x128xf32>
    %c113 = arith.constant 113 : index
    %308 = memref.load %arg4[%c113] : memref<192xf32, #tpu.memory_space<smem>>
    %309 = vector.broadcast %308 : f32 to vector<15x128xf32>
    %310 = arith.mulf %309, %40 : vector<15x128xf32>
    %311 = arith.addf %307, %310 : vector<15x128xf32>
    %c177 = arith.constant 177 : index
    %312 = memref.load %arg4[%c177] : memref<192xf32, #tpu.memory_space<smem>>
    %313 = vector.broadcast %312 : f32 to vector<15x128xf32>
    %314 = arith.mulf %313, %232 : vector<15x128xf32>
    %315 = arith.addf %311, %314 : vector<15x128xf32>
    %316 = arith.addf %217, %315 : vector<15x128xf32>
    %c57 = arith.constant 57 : index
    %317 = memref.load %arg4[%c57] : memref<192xf32, #tpu.memory_space<smem>>
    %318 = vector.broadcast %317 : f32 to vector<15x128xf32>
    %319 = arith.mulf %318, %230 : vector<15x128xf32>
    %c121 = arith.constant 121 : index
    %320 = memref.load %arg4[%c121] : memref<192xf32, #tpu.memory_space<smem>>
    %321 = vector.broadcast %320 : f32 to vector<15x128xf32>
    %322 = arith.mulf %321, %40 : vector<15x128xf32>
    %323 = arith.addf %319, %322 : vector<15x128xf32>
    %c185 = arith.constant 185 : index
    %324 = memref.load %arg4[%c185] : memref<192xf32, #tpu.memory_space<smem>>
    %325 = vector.broadcast %324 : f32 to vector<15x128xf32>
    %326 = arith.mulf %325, %232 : vector<15x128xf32>
    %327 = arith.addf %323, %326 : vector<15x128xf32>
    %328 = arith.addf %228, %327 : vector<15x128xf32>
    %329 = vector.extract_strided_slice %56 {offsets = [0, 0], sizes = [14, 128], strides = [1, 1]} : vector<15x128xf32> to vector<14x128xf32>
    %330 = tpu.concatenate %4, %329 in 0 : vector<1x128xf32>, vector<14x128xf32> -> vector<15x128xf32>
    %331 = vector.extract_strided_slice %56 {offsets = [1, 0], sizes = [14, 128], strides = [1, 1]} : vector<15x128xf32> to vector<14x128xf32>
    %332 = tpu.concatenate %331, %4 in 0 : vector<14x128xf32>, vector<1x128xf32> -> vector<15x128xf32>
    %c2_24 = arith.constant 2 : index
    %333 = memref.load %arg4[%c2_24] : memref<192xf32, #tpu.memory_space<smem>>
    %334 = vector.broadcast %333 : f32 to vector<15x128xf32>
    %335 = arith.mulf %334, %330 : vector<15x128xf32>
    %c66 = arith.constant 66 : index
    %336 = memref.load %arg4[%c66] : memref<192xf32, #tpu.memory_space<smem>>
    %337 = vector.broadcast %336 : f32 to vector<15x128xf32>
    %338 = arith.mulf %337, %56 : vector<15x128xf32>
    %339 = arith.addf %335, %338 : vector<15x128xf32>
    %c130 = arith.constant 130 : index
    %340 = memref.load %arg4[%c130] : memref<192xf32, #tpu.memory_space<smem>>
    %341 = vector.broadcast %340 : f32 to vector<15x128xf32>
    %342 = arith.mulf %341, %332 : vector<15x128xf32>
    %343 = arith.addf %339, %342 : vector<15x128xf32>
    %344 = arith.addf %244, %343 : vector<15x128xf32>
    %c10_25 = arith.constant 10 : index
    %345 = memref.load %arg4[%c10_25] : memref<192xf32, #tpu.memory_space<smem>>
    %346 = vector.broadcast %345 : f32 to vector<15x128xf32>
    %347 = arith.mulf %346, %330 : vector<15x128xf32>
    %c74 = arith.constant 74 : index
    %348 = memref.load %arg4[%c74] : memref<192xf32, #tpu.memory_space<smem>>
    %349 = vector.broadcast %348 : f32 to vector<15x128xf32>
    %350 = arith.mulf %349, %56 : vector<15x128xf32>
    %351 = arith.addf %347, %350 : vector<15x128xf32>
    %c138 = arith.constant 138 : index
    %352 = memref.load %arg4[%c138] : memref<192xf32, #tpu.memory_space<smem>>
    %353 = vector.broadcast %352 : f32 to vector<15x128xf32>
    %354 = arith.mulf %353, %332 : vector<15x128xf32>
    %355 = arith.addf %351, %354 : vector<15x128xf32>
    %356 = arith.addf %256, %355 : vector<15x128xf32>
    %c18_26 = arith.constant 18 : index
    %357 = memref.load %arg4[%c18_26] : memref<192xf32, #tpu.memory_space<smem>>
    %358 = vector.broadcast %357 : f32 to vector<15x128xf32>
    %359 = arith.mulf %358, %330 : vector<15x128xf32>
    %c82 = arith.constant 82 : index
    %360 = memref.load %arg4[%c82] : memref<192xf32, #tpu.memory_space<smem>>
    %361 = vector.broadcast %360 : f32 to vector<15x128xf32>
    %362 = arith.mulf %361, %56 : vector<15x128xf32>
    %363 = arith.addf %359, %362 : vector<15x128xf32>
    %c146 = arith.constant 146 : index
    %364 = memref.load %arg4[%c146] : memref<192xf32, #tpu.memory_space<smem>>
    %365 = vector.broadcast %364 : f32 to vector<15x128xf32>
    %366 = arith.mulf %365, %332 : vector<15x128xf32>
    %367 = arith.addf %363, %366 : vector<15x128xf32>
    %368 = arith.addf %268, %367 : vector<15x128xf32>
    %c26 = arith.constant 26 : index
    %369 = memref.load %arg4[%c26] : memref<192xf32, #tpu.memory_space<smem>>
    %370 = vector.broadcast %369 : f32 to vector<15x128xf32>
    %371 = arith.mulf %370, %330 : vector<15x128xf32>
    %c90 = arith.constant 90 : index
    %372 = memref.load %arg4[%c90] : memref<192xf32, #tpu.memory_space<smem>>
    %373 = vector.broadcast %372 : f32 to vector<15x128xf32>
    %374 = arith.mulf %373, %56 : vector<15x128xf32>
    %375 = arith.addf %371, %374 : vector<15x128xf32>
    %c154 = arith.constant 154 : index
    %376 = memref.load %arg4[%c154] : memref<192xf32, #tpu.memory_space<smem>>
    %377 = vector.broadcast %376 : f32 to vector<15x128xf32>
    %378 = arith.mulf %377, %332 : vector<15x128xf32>
    %379 = arith.addf %375, %378 : vector<15x128xf32>
    %380 = arith.addf %280, %379 : vector<15x128xf32>
    %c34 = arith.constant 34 : index
    %381 = memref.load %arg4[%c34] : memref<192xf32, #tpu.memory_space<smem>>
    %382 = vector.broadcast %381 : f32 to vector<15x128xf32>
    %383 = arith.mulf %382, %330 : vector<15x128xf32>
    %c98 = arith.constant 98 : index
    %384 = memref.load %arg4[%c98] : memref<192xf32, #tpu.memory_space<smem>>
    %385 = vector.broadcast %384 : f32 to vector<15x128xf32>
    %386 = arith.mulf %385, %56 : vector<15x128xf32>
    %387 = arith.addf %383, %386 : vector<15x128xf32>
    %c162 = arith.constant 162 : index
    %388 = memref.load %arg4[%c162] : memref<192xf32, #tpu.memory_space<smem>>
    %389 = vector.broadcast %388 : f32 to vector<15x128xf32>
    %390 = arith.mulf %389, %332 : vector<15x128xf32>
    %391 = arith.addf %387, %390 : vector<15x128xf32>
    %392 = arith.addf %292, %391 : vector<15x128xf32>
    %c42 = arith.constant 42 : index
    %393 = memref.load %arg4[%c42] : memref<192xf32, #tpu.memory_space<smem>>
    %394 = vector.broadcast %393 : f32 to vector<15x128xf32>
    %395 = arith.mulf %394, %330 : vector<15x128xf32>
    %c106 = arith.constant 106 : index
    %396 = memref.load %arg4[%c106] : memref<192xf32, #tpu.memory_space<smem>>
    %397 = vector.broadcast %396 : f32 to vector<15x128xf32>
    %398 = arith.mulf %397, %56 : vector<15x128xf32>
    %399 = arith.addf %395, %398 : vector<15x128xf32>
    %c170 = arith.constant 170 : index
    %400 = memref.load %arg4[%c170] : memref<192xf32, #tpu.memory_space<smem>>
    %401 = vector.broadcast %400 : f32 to vector<15x128xf32>
    %402 = arith.mulf %401, %332 : vector<15x128xf32>
    %403 = arith.addf %399, %402 : vector<15x128xf32>
    %404 = arith.addf %304, %403 : vector<15x128xf32>
    %c50 = arith.constant 50 : index
    %405 = memref.load %arg4[%c50] : memref<192xf32, #tpu.memory_space<smem>>
    %406 = vector.broadcast %405 : f32 to vector<15x128xf32>
    %407 = arith.mulf %406, %330 : vector<15x128xf32>
    %c114 = arith.constant 114 : index
    %408 = memref.load %arg4[%c114] : memref<192xf32, #tpu.memory_space<smem>>
    %409 = vector.broadcast %408 : f32 to vector<15x128xf32>
    %410 = arith.mulf %409, %56 : vector<15x128xf32>
    %411 = arith.addf %407, %410 : vector<15x128xf32>
    %c178 = arith.constant 178 : index
    %412 = memref.load %arg4[%c178] : memref<192xf32, #tpu.memory_space<smem>>
    %413 = vector.broadcast %412 : f32 to vector<15x128xf32>
    %414 = arith.mulf %413, %332 : vector<15x128xf32>
    %415 = arith.addf %411, %414 : vector<15x128xf32>
    %416 = arith.addf %316, %415 : vector<15x128xf32>
    %c58 = arith.constant 58 : index
    %417 = memref.load %arg4[%c58] : memref<192xf32, #tpu.memory_space<smem>>
    %418 = vector.broadcast %417 : f32 to vector<15x128xf32>
    %419 = arith.mulf %418, %330 : vector<15x128xf32>
    %c122 = arith.constant 122 : index
    %420 = memref.load %arg4[%c122] : memref<192xf32, #tpu.memory_space<smem>>
    %421 = vector.broadcast %420 : f32 to vector<15x128xf32>
    %422 = arith.mulf %421, %56 : vector<15x128xf32>
    %423 = arith.addf %419, %422 : vector<15x128xf32>
    %c186 = arith.constant 186 : index
    %424 = memref.load %arg4[%c186] : memref<192xf32, #tpu.memory_space<smem>>
    %425 = vector.broadcast %424 : f32 to vector<15x128xf32>
    %426 = arith.mulf %425, %332 : vector<15x128xf32>
    %427 = arith.addf %423, %426 : vector<15x128xf32>
    %428 = arith.addf %328, %427 : vector<15x128xf32>
    %429 = vector.extract_strided_slice %72 {offsets = [0, 0], sizes = [14, 128], strides = [1, 1]} : vector<15x128xf32> to vector<14x128xf32>
    %430 = tpu.concatenate %4, %429 in 0 : vector<1x128xf32>, vector<14x128xf32> -> vector<15x128xf32>
    %431 = vector.extract_strided_slice %72 {offsets = [1, 0], sizes = [14, 128], strides = [1, 1]} : vector<15x128xf32> to vector<14x128xf32>
    %432 = tpu.concatenate %431, %4 in 0 : vector<14x128xf32>, vector<1x128xf32> -> vector<15x128xf32>
    %c3_27 = arith.constant 3 : index
    %433 = memref.load %arg4[%c3_27] : memref<192xf32, #tpu.memory_space<smem>>
    %434 = vector.broadcast %433 : f32 to vector<15x128xf32>
    %435 = arith.mulf %434, %430 : vector<15x128xf32>
    %c67 = arith.constant 67 : index
    %436 = memref.load %arg4[%c67] : memref<192xf32, #tpu.memory_space<smem>>
    %437 = vector.broadcast %436 : f32 to vector<15x128xf32>
    %438 = arith.mulf %437, %72 : vector<15x128xf32>
    %439 = arith.addf %435, %438 : vector<15x128xf32>
    %c131 = arith.constant 131 : index
    %440 = memref.load %arg4[%c131] : memref<192xf32, #tpu.memory_space<smem>>
    %441 = vector.broadcast %440 : f32 to vector<15x128xf32>
    %442 = arith.mulf %441, %432 : vector<15x128xf32>
    %443 = arith.addf %439, %442 : vector<15x128xf32>
    %444 = arith.addf %344, %443 : vector<15x128xf32>
    %c11_28 = arith.constant 11 : index
    %445 = memref.load %arg4[%c11_28] : memref<192xf32, #tpu.memory_space<smem>>
    %446 = vector.broadcast %445 : f32 to vector<15x128xf32>
    %447 = arith.mulf %446, %430 : vector<15x128xf32>
    %c75 = arith.constant 75 : index
    %448 = memref.load %arg4[%c75] : memref<192xf32, #tpu.memory_space<smem>>
    %449 = vector.broadcast %448 : f32 to vector<15x128xf32>
    %450 = arith.mulf %449, %72 : vector<15x128xf32>
    %451 = arith.addf %447, %450 : vector<15x128xf32>
    %c139 = arith.constant 139 : index
    %452 = memref.load %arg4[%c139] : memref<192xf32, #tpu.memory_space<smem>>
    %453 = vector.broadcast %452 : f32 to vector<15x128xf32>
    %454 = arith.mulf %453, %432 : vector<15x128xf32>
    %455 = arith.addf %451, %454 : vector<15x128xf32>
    %456 = arith.addf %356, %455 : vector<15x128xf32>
    %c19_29 = arith.constant 19 : index
    %457 = memref.load %arg4[%c19_29] : memref<192xf32, #tpu.memory_space<smem>>
    %458 = vector.broadcast %457 : f32 to vector<15x128xf32>
    %459 = arith.mulf %458, %430 : vector<15x128xf32>
    %c83 = arith.constant 83 : index
    %460 = memref.load %arg4[%c83] : memref<192xf32, #tpu.memory_space<smem>>
    %461 = vector.broadcast %460 : f32 to vector<15x128xf32>
    %462 = arith.mulf %461, %72 : vector<15x128xf32>
    %463 = arith.addf %459, %462 : vector<15x128xf32>
    %c147 = arith.constant 147 : index
    %464 = memref.load %arg4[%c147] : memref<192xf32, #tpu.memory_space<smem>>
    %465 = vector.broadcast %464 : f32 to vector<15x128xf32>
    %466 = arith.mulf %465, %432 : vector<15x128xf32>
    %467 = arith.addf %463, %466 : vector<15x128xf32>
    %468 = arith.addf %368, %467 : vector<15x128xf32>
    %c27 = arith.constant 27 : index
    %469 = memref.load %arg4[%c27] : memref<192xf32, #tpu.memory_space<smem>>
    %470 = vector.broadcast %469 : f32 to vector<15x128xf32>
    %471 = arith.mulf %470, %430 : vector<15x128xf32>
    %c91 = arith.constant 91 : index
    %472 = memref.load %arg4[%c91] : memref<192xf32, #tpu.memory_space<smem>>
    %473 = vector.broadcast %472 : f32 to vector<15x128xf32>
    %474 = arith.mulf %473, %72 : vector<15x128xf32>
    %475 = arith.addf %471, %474 : vector<15x128xf32>
    %c155 = arith.constant 155 : index
    %476 = memref.load %arg4[%c155] : memref<192xf32, #tpu.memory_space<smem>>
    %477 = vector.broadcast %476 : f32 to vector<15x128xf32>
    %478 = arith.mulf %477, %432 : vector<15x128xf32>
    %479 = arith.addf %475, %478 : vector<15x128xf32>
    %480 = arith.addf %380, %479 : vector<15x128xf32>
    %c35 = arith.constant 35 : index
    %481 = memref.load %arg4[%c35] : memref<192xf32, #tpu.memory_space<smem>>
    %482 = vector.broadcast %481 : f32 to vector<15x128xf32>
    %483 = arith.mulf %482, %430 : vector<15x128xf32>
    %c99 = arith.constant 99 : index
    %484 = memref.load %arg4[%c99] : memref<192xf32, #tpu.memory_space<smem>>
    %485 = vector.broadcast %484 : f32 to vector<15x128xf32>
    %486 = arith.mulf %485, %72 : vector<15x128xf32>
    %487 = arith.addf %483, %486 : vector<15x128xf32>
    %c163 = arith.constant 163 : index
    %488 = memref.load %arg4[%c163] : memref<192xf32, #tpu.memory_space<smem>>
    %489 = vector.broadcast %488 : f32 to vector<15x128xf32>
    %490 = arith.mulf %489, %432 : vector<15x128xf32>
    %491 = arith.addf %487, %490 : vector<15x128xf32>
    %492 = arith.addf %392, %491 : vector<15x128xf32>
    %c43 = arith.constant 43 : index
    %493 = memref.load %arg4[%c43] : memref<192xf32, #tpu.memory_space<smem>>
    %494 = vector.broadcast %493 : f32 to vector<15x128xf32>
    %495 = arith.mulf %494, %430 : vector<15x128xf32>
    %c107 = arith.constant 107 : index
    %496 = memref.load %arg4[%c107] : memref<192xf32, #tpu.memory_space<smem>>
    %497 = vector.broadcast %496 : f32 to vector<15x128xf32>
    %498 = arith.mulf %497, %72 : vector<15x128xf32>
    %499 = arith.addf %495, %498 : vector<15x128xf32>
    %c171 = arith.constant 171 : index
    %500 = memref.load %arg4[%c171] : memref<192xf32, #tpu.memory_space<smem>>
    %501 = vector.broadcast %500 : f32 to vector<15x128xf32>
    %502 = arith.mulf %501, %432 : vector<15x128xf32>
    %503 = arith.addf %499, %502 : vector<15x128xf32>
    %504 = arith.addf %404, %503 : vector<15x128xf32>
    %c51 = arith.constant 51 : index
    %505 = memref.load %arg4[%c51] : memref<192xf32, #tpu.memory_space<smem>>
    %506 = vector.broadcast %505 : f32 to vector<15x128xf32>
    %507 = arith.mulf %506, %430 : vector<15x128xf32>
    %c115 = arith.constant 115 : index
    %508 = memref.load %arg4[%c115] : memref<192xf32, #tpu.memory_space<smem>>
    %509 = vector.broadcast %508 : f32 to vector<15x128xf32>
    %510 = arith.mulf %509, %72 : vector<15x128xf32>
    %511 = arith.addf %507, %510 : vector<15x128xf32>
    %c179 = arith.constant 179 : index
    %512 = memref.load %arg4[%c179] : memref<192xf32, #tpu.memory_space<smem>>
    %513 = vector.broadcast %512 : f32 to vector<15x128xf32>
    %514 = arith.mulf %513, %432 : vector<15x128xf32>
    %515 = arith.addf %511, %514 : vector<15x128xf32>
    %516 = arith.addf %416, %515 : vector<15x128xf32>
    %c59 = arith.constant 59 : index
    %517 = memref.load %arg4[%c59] : memref<192xf32, #tpu.memory_space<smem>>
    %518 = vector.broadcast %517 : f32 to vector<15x128xf32>
    %519 = arith.mulf %518, %430 : vector<15x128xf32>
    %c123 = arith.constant 123 : index
    %520 = memref.load %arg4[%c123] : memref<192xf32, #tpu.memory_space<smem>>
    %521 = vector.broadcast %520 : f32 to vector<15x128xf32>
    %522 = arith.mulf %521, %72 : vector<15x128xf32>
    %523 = arith.addf %519, %522 : vector<15x128xf32>
    %c187 = arith.constant 187 : index
    %524 = memref.load %arg4[%c187] : memref<192xf32, #tpu.memory_space<smem>>
    %525 = vector.broadcast %524 : f32 to vector<15x128xf32>
    %526 = arith.mulf %525, %432 : vector<15x128xf32>
    %527 = arith.addf %523, %526 : vector<15x128xf32>
    %528 = arith.addf %428, %527 : vector<15x128xf32>
    %529 = vector.extract_strided_slice %88 {offsets = [0, 0], sizes = [14, 128], strides = [1, 1]} : vector<15x128xf32> to vector<14x128xf32>
    %530 = tpu.concatenate %4, %529 in 0 : vector<1x128xf32>, vector<14x128xf32> -> vector<15x128xf32>
    %531 = vector.extract_strided_slice %88 {offsets = [1, 0], sizes = [14, 128], strides = [1, 1]} : vector<15x128xf32> to vector<14x128xf32>
    %532 = tpu.concatenate %531, %4 in 0 : vector<14x128xf32>, vector<1x128xf32> -> vector<15x128xf32>
    %c4_30 = arith.constant 4 : index
    %533 = memref.load %arg4[%c4_30] : memref<192xf32, #tpu.memory_space<smem>>
    %534 = vector.broadcast %533 : f32 to vector<15x128xf32>
    %535 = arith.mulf %534, %530 : vector<15x128xf32>
    %c68 = arith.constant 68 : index
    %536 = memref.load %arg4[%c68] : memref<192xf32, #tpu.memory_space<smem>>
    %537 = vector.broadcast %536 : f32 to vector<15x128xf32>
    %538 = arith.mulf %537, %88 : vector<15x128xf32>
    %539 = arith.addf %535, %538 : vector<15x128xf32>
    %c132 = arith.constant 132 : index
    %540 = memref.load %arg4[%c132] : memref<192xf32, #tpu.memory_space<smem>>
    %541 = vector.broadcast %540 : f32 to vector<15x128xf32>
    %542 = arith.mulf %541, %532 : vector<15x128xf32>
    %543 = arith.addf %539, %542 : vector<15x128xf32>
    %544 = arith.addf %444, %543 : vector<15x128xf32>
    %c12_31 = arith.constant 12 : index
    %545 = memref.load %arg4[%c12_31] : memref<192xf32, #tpu.memory_space<smem>>
    %546 = vector.broadcast %545 : f32 to vector<15x128xf32>
    %547 = arith.mulf %546, %530 : vector<15x128xf32>
    %c76 = arith.constant 76 : index
    %548 = memref.load %arg4[%c76] : memref<192xf32, #tpu.memory_space<smem>>
    %549 = vector.broadcast %548 : f32 to vector<15x128xf32>
    %550 = arith.mulf %549, %88 : vector<15x128xf32>
    %551 = arith.addf %547, %550 : vector<15x128xf32>
    %c140 = arith.constant 140 : index
    %552 = memref.load %arg4[%c140] : memref<192xf32, #tpu.memory_space<smem>>
    %553 = vector.broadcast %552 : f32 to vector<15x128xf32>
    %554 = arith.mulf %553, %532 : vector<15x128xf32>
    %555 = arith.addf %551, %554 : vector<15x128xf32>
    %556 = arith.addf %456, %555 : vector<15x128xf32>
    %c20_32 = arith.constant 20 : index
    %557 = memref.load %arg4[%c20_32] : memref<192xf32, #tpu.memory_space<smem>>
    %558 = vector.broadcast %557 : f32 to vector<15x128xf32>
    %559 = arith.mulf %558, %530 : vector<15x128xf32>
    %c84 = arith.constant 84 : index
    %560 = memref.load %arg4[%c84] : memref<192xf32, #tpu.memory_space<smem>>
    %561 = vector.broadcast %560 : f32 to vector<15x128xf32>
    %562 = arith.mulf %561, %88 : vector<15x128xf32>
    %563 = arith.addf %559, %562 : vector<15x128xf32>
    %c148 = arith.constant 148 : index
    %564 = memref.load %arg4[%c148] : memref<192xf32, #tpu.memory_space<smem>>
    %565 = vector.broadcast %564 : f32 to vector<15x128xf32>
    %566 = arith.mulf %565, %532 : vector<15x128xf32>
    %567 = arith.addf %563, %566 : vector<15x128xf32>
    %568 = arith.addf %468, %567 : vector<15x128xf32>
    %c28 = arith.constant 28 : index
    %569 = memref.load %arg4[%c28] : memref<192xf32, #tpu.memory_space<smem>>
    %570 = vector.broadcast %569 : f32 to vector<15x128xf32>
    %571 = arith.mulf %570, %530 : vector<15x128xf32>
    %c92 = arith.constant 92 : index
    %572 = memref.load %arg4[%c92] : memref<192xf32, #tpu.memory_space<smem>>
    %573 = vector.broadcast %572 : f32 to vector<15x128xf32>
    %574 = arith.mulf %573, %88 : vector<15x128xf32>
    %575 = arith.addf %571, %574 : vector<15x128xf32>
    %c156 = arith.constant 156 : index
    %576 = memref.load %arg4[%c156] : memref<192xf32, #tpu.memory_space<smem>>
    %577 = vector.broadcast %576 : f32 to vector<15x128xf32>
    %578 = arith.mulf %577, %532 : vector<15x128xf32>
    %579 = arith.addf %575, %578 : vector<15x128xf32>
    %580 = arith.addf %480, %579 : vector<15x128xf32>
    %c36 = arith.constant 36 : index
    %581 = memref.load %arg4[%c36] : memref<192xf32, #tpu.memory_space<smem>>
    %582 = vector.broadcast %581 : f32 to vector<15x128xf32>
    %583 = arith.mulf %582, %530 : vector<15x128xf32>
    %c100 = arith.constant 100 : index
    %584 = memref.load %arg4[%c100] : memref<192xf32, #tpu.memory_space<smem>>
    %585 = vector.broadcast %584 : f32 to vector<15x128xf32>
    %586 = arith.mulf %585, %88 : vector<15x128xf32>
    %587 = arith.addf %583, %586 : vector<15x128xf32>
    %c164 = arith.constant 164 : index
    %588 = memref.load %arg4[%c164] : memref<192xf32, #tpu.memory_space<smem>>
    %589 = vector.broadcast %588 : f32 to vector<15x128xf32>
    %590 = arith.mulf %589, %532 : vector<15x128xf32>
    %591 = arith.addf %587, %590 : vector<15x128xf32>
    %592 = arith.addf %492, %591 : vector<15x128xf32>
    %c44 = arith.constant 44 : index
    %593 = memref.load %arg4[%c44] : memref<192xf32, #tpu.memory_space<smem>>
    %594 = vector.broadcast %593 : f32 to vector<15x128xf32>
    %595 = arith.mulf %594, %530 : vector<15x128xf32>
    %c108 = arith.constant 108 : index
    %596 = memref.load %arg4[%c108] : memref<192xf32, #tpu.memory_space<smem>>
    %597 = vector.broadcast %596 : f32 to vector<15x128xf32>
    %598 = arith.mulf %597, %88 : vector<15x128xf32>
    %599 = arith.addf %595, %598 : vector<15x128xf32>
    %c172 = arith.constant 172 : index
    %600 = memref.load %arg4[%c172] : memref<192xf32, #tpu.memory_space<smem>>
    %601 = vector.broadcast %600 : f32 to vector<15x128xf32>
    %602 = arith.mulf %601, %532 : vector<15x128xf32>
    %603 = arith.addf %599, %602 : vector<15x128xf32>
    %604 = arith.addf %504, %603 : vector<15x128xf32>
    %c52 = arith.constant 52 : index
    %605 = memref.load %arg4[%c52] : memref<192xf32, #tpu.memory_space<smem>>
    %606 = vector.broadcast %605 : f32 to vector<15x128xf32>
    %607 = arith.mulf %606, %530 : vector<15x128xf32>
    %c116 = arith.constant 116 : index
    %608 = memref.load %arg4[%c116] : memref<192xf32, #tpu.memory_space<smem>>
    %609 = vector.broadcast %608 : f32 to vector<15x128xf32>
    %610 = arith.mulf %609, %88 : vector<15x128xf32>
    %611 = arith.addf %607, %610 : vector<15x128xf32>
    %c180 = arith.constant 180 : index
    %612 = memref.load %arg4[%c180] : memref<192xf32, #tpu.memory_space<smem>>
    %613 = vector.broadcast %612 : f32 to vector<15x128xf32>
    %614 = arith.mulf %613, %532 : vector<15x128xf32>
    %615 = arith.addf %611, %614 : vector<15x128xf32>
    %616 = arith.addf %516, %615 : vector<15x128xf32>
    %c60 = arith.constant 60 : index
    %617 = memref.load %arg4[%c60] : memref<192xf32, #tpu.memory_space<smem>>
    %618 = vector.broadcast %617 : f32 to vector<15x128xf32>
    %619 = arith.mulf %618, %530 : vector<15x128xf32>
    %c124 = arith.constant 124 : index
    %620 = memref.load %arg4[%c124] : memref<192xf32, #tpu.memory_space<smem>>
    %621 = vector.broadcast %620 : f32 to vector<15x128xf32>
    %622 = arith.mulf %621, %88 : vector<15x128xf32>
    %623 = arith.addf %619, %622 : vector<15x128xf32>
    %c188 = arith.constant 188 : index
    %624 = memref.load %arg4[%c188] : memref<192xf32, #tpu.memory_space<smem>>
    %625 = vector.broadcast %624 : f32 to vector<15x128xf32>
    %626 = arith.mulf %625, %532 : vector<15x128xf32>
    %627 = arith.addf %623, %626 : vector<15x128xf32>
    %628 = arith.addf %528, %627 : vector<15x128xf32>
    %629 = vector.extract_strided_slice %104 {offsets = [0, 0], sizes = [14, 128], strides = [1, 1]} : vector<15x128xf32> to vector<14x128xf32>
    %630 = tpu.concatenate %4, %629 in 0 : vector<1x128xf32>, vector<14x128xf32> -> vector<15x128xf32>
    %631 = vector.extract_strided_slice %104 {offsets = [1, 0], sizes = [14, 128], strides = [1, 1]} : vector<15x128xf32> to vector<14x128xf32>
    %632 = tpu.concatenate %631, %4 in 0 : vector<14x128xf32>, vector<1x128xf32> -> vector<15x128xf32>
    %c5_33 = arith.constant 5 : index
    %633 = memref.load %arg4[%c5_33] : memref<192xf32, #tpu.memory_space<smem>>
    %634 = vector.broadcast %633 : f32 to vector<15x128xf32>
    %635 = arith.mulf %634, %630 : vector<15x128xf32>
    %c69 = arith.constant 69 : index
    %636 = memref.load %arg4[%c69] : memref<192xf32, #tpu.memory_space<smem>>
    %637 = vector.broadcast %636 : f32 to vector<15x128xf32>
    %638 = arith.mulf %637, %104 : vector<15x128xf32>
    %639 = arith.addf %635, %638 : vector<15x128xf32>
    %c133 = arith.constant 133 : index
    %640 = memref.load %arg4[%c133] : memref<192xf32, #tpu.memory_space<smem>>
    %641 = vector.broadcast %640 : f32 to vector<15x128xf32>
    %642 = arith.mulf %641, %632 : vector<15x128xf32>
    %643 = arith.addf %639, %642 : vector<15x128xf32>
    %644 = arith.addf %544, %643 : vector<15x128xf32>
    %c13_34 = arith.constant 13 : index
    %645 = memref.load %arg4[%c13_34] : memref<192xf32, #tpu.memory_space<smem>>
    %646 = vector.broadcast %645 : f32 to vector<15x128xf32>
    %647 = arith.mulf %646, %630 : vector<15x128xf32>
    %c77 = arith.constant 77 : index
    %648 = memref.load %arg4[%c77] : memref<192xf32, #tpu.memory_space<smem>>
    %649 = vector.broadcast %648 : f32 to vector<15x128xf32>
    %650 = arith.mulf %649, %104 : vector<15x128xf32>
    %651 = arith.addf %647, %650 : vector<15x128xf32>
    %c141 = arith.constant 141 : index
    %652 = memref.load %arg4[%c141] : memref<192xf32, #tpu.memory_space<smem>>
    %653 = vector.broadcast %652 : f32 to vector<15x128xf32>
    %654 = arith.mulf %653, %632 : vector<15x128xf32>
    %655 = arith.addf %651, %654 : vector<15x128xf32>
    %656 = arith.addf %556, %655 : vector<15x128xf32>
    %c21_35 = arith.constant 21 : index
    %657 = memref.load %arg4[%c21_35] : memref<192xf32, #tpu.memory_space<smem>>
    %658 = vector.broadcast %657 : f32 to vector<15x128xf32>
    %659 = arith.mulf %658, %630 : vector<15x128xf32>
    %c85 = arith.constant 85 : index
    %660 = memref.load %arg4[%c85] : memref<192xf32, #tpu.memory_space<smem>>
    %661 = vector.broadcast %660 : f32 to vector<15x128xf32>
    %662 = arith.mulf %661, %104 : vector<15x128xf32>
    %663 = arith.addf %659, %662 : vector<15x128xf32>
    %c149 = arith.constant 149 : index
    %664 = memref.load %arg4[%c149] : memref<192xf32, #tpu.memory_space<smem>>
    %665 = vector.broadcast %664 : f32 to vector<15x128xf32>
    %666 = arith.mulf %665, %632 : vector<15x128xf32>
    %667 = arith.addf %663, %666 : vector<15x128xf32>
    %668 = arith.addf %568, %667 : vector<15x128xf32>
    %c29 = arith.constant 29 : index
    %669 = memref.load %arg4[%c29] : memref<192xf32, #tpu.memory_space<smem>>
    %670 = vector.broadcast %669 : f32 to vector<15x128xf32>
    %671 = arith.mulf %670, %630 : vector<15x128xf32>
    %c93 = arith.constant 93 : index
    %672 = memref.load %arg4[%c93] : memref<192xf32, #tpu.memory_space<smem>>
    %673 = vector.broadcast %672 : f32 to vector<15x128xf32>
    %674 = arith.mulf %673, %104 : vector<15x128xf32>
    %675 = arith.addf %671, %674 : vector<15x128xf32>
    %c157 = arith.constant 157 : index
    %676 = memref.load %arg4[%c157] : memref<192xf32, #tpu.memory_space<smem>>
    %677 = vector.broadcast %676 : f32 to vector<15x128xf32>
    %678 = arith.mulf %677, %632 : vector<15x128xf32>
    %679 = arith.addf %675, %678 : vector<15x128xf32>
    %680 = arith.addf %580, %679 : vector<15x128xf32>
    %c37 = arith.constant 37 : index
    %681 = memref.load %arg4[%c37] : memref<192xf32, #tpu.memory_space<smem>>
    %682 = vector.broadcast %681 : f32 to vector<15x128xf32>
    %683 = arith.mulf %682, %630 : vector<15x128xf32>
    %c101 = arith.constant 101 : index
    %684 = memref.load %arg4[%c101] : memref<192xf32, #tpu.memory_space<smem>>
    %685 = vector.broadcast %684 : f32 to vector<15x128xf32>
    %686 = arith.mulf %685, %104 : vector<15x128xf32>
    %687 = arith.addf %683, %686 : vector<15x128xf32>
    %c165 = arith.constant 165 : index
    %688 = memref.load %arg4[%c165] : memref<192xf32, #tpu.memory_space<smem>>
    %689 = vector.broadcast %688 : f32 to vector<15x128xf32>
    %690 = arith.mulf %689, %632 : vector<15x128xf32>
    %691 = arith.addf %687, %690 : vector<15x128xf32>
    %692 = arith.addf %592, %691 : vector<15x128xf32>
    %c45 = arith.constant 45 : index
    %693 = memref.load %arg4[%c45] : memref<192xf32, #tpu.memory_space<smem>>
    %694 = vector.broadcast %693 : f32 to vector<15x128xf32>
    %695 = arith.mulf %694, %630 : vector<15x128xf32>
    %c109 = arith.constant 109 : index
    %696 = memref.load %arg4[%c109] : memref<192xf32, #tpu.memory_space<smem>>
    %697 = vector.broadcast %696 : f32 to vector<15x128xf32>
    %698 = arith.mulf %697, %104 : vector<15x128xf32>
    %699 = arith.addf %695, %698 : vector<15x128xf32>
    %c173 = arith.constant 173 : index
    %700 = memref.load %arg4[%c173] : memref<192xf32, #tpu.memory_space<smem>>
    %701 = vector.broadcast %700 : f32 to vector<15x128xf32>
    %702 = arith.mulf %701, %632 : vector<15x128xf32>
    %703 = arith.addf %699, %702 : vector<15x128xf32>
    %704 = arith.addf %604, %703 : vector<15x128xf32>
    %c53 = arith.constant 53 : index
    %705 = memref.load %arg4[%c53] : memref<192xf32, #tpu.memory_space<smem>>
    %706 = vector.broadcast %705 : f32 to vector<15x128xf32>
    %707 = arith.mulf %706, %630 : vector<15x128xf32>
    %c117 = arith.constant 117 : index
    %708 = memref.load %arg4[%c117] : memref<192xf32, #tpu.memory_space<smem>>
    %709 = vector.broadcast %708 : f32 to vector<15x128xf32>
    %710 = arith.mulf %709, %104 : vector<15x128xf32>
    %711 = arith.addf %707, %710 : vector<15x128xf32>
    %c181 = arith.constant 181 : index
    %712 = memref.load %arg4[%c181] : memref<192xf32, #tpu.memory_space<smem>>
    %713 = vector.broadcast %712 : f32 to vector<15x128xf32>
    %714 = arith.mulf %713, %632 : vector<15x128xf32>
    %715 = arith.addf %711, %714 : vector<15x128xf32>
    %716 = arith.addf %616, %715 : vector<15x128xf32>
    %c61 = arith.constant 61 : index
    %717 = memref.load %arg4[%c61] : memref<192xf32, #tpu.memory_space<smem>>
    %718 = vector.broadcast %717 : f32 to vector<15x128xf32>
    %719 = arith.mulf %718, %630 : vector<15x128xf32>
    %c125 = arith.constant 125 : index
    %720 = memref.load %arg4[%c125] : memref<192xf32, #tpu.memory_space<smem>>
    %721 = vector.broadcast %720 : f32 to vector<15x128xf32>
    %722 = arith.mulf %721, %104 : vector<15x128xf32>
    %723 = arith.addf %719, %722 : vector<15x128xf32>
    %c189 = arith.constant 189 : index
    %724 = memref.load %arg4[%c189] : memref<192xf32, #tpu.memory_space<smem>>
    %725 = vector.broadcast %724 : f32 to vector<15x128xf32>
    %726 = arith.mulf %725, %632 : vector<15x128xf32>
    %727 = arith.addf %723, %726 : vector<15x128xf32>
    %728 = arith.addf %628, %727 : vector<15x128xf32>
    %729 = vector.extract_strided_slice %120 {offsets = [0, 0], sizes = [14, 128], strides = [1, 1]} : vector<15x128xf32> to vector<14x128xf32>
    %730 = tpu.concatenate %4, %729 in 0 : vector<1x128xf32>, vector<14x128xf32> -> vector<15x128xf32>
    %731 = vector.extract_strided_slice %120 {offsets = [1, 0], sizes = [14, 128], strides = [1, 1]} : vector<15x128xf32> to vector<14x128xf32>
    %732 = tpu.concatenate %731, %4 in 0 : vector<14x128xf32>, vector<1x128xf32> -> vector<15x128xf32>
    %c6_36 = arith.constant 6 : index
    %733 = memref.load %arg4[%c6_36] : memref<192xf32, #tpu.memory_space<smem>>
    %734 = vector.broadcast %733 : f32 to vector<15x128xf32>
    %735 = arith.mulf %734, %730 : vector<15x128xf32>
    %c70 = arith.constant 70 : index
    %736 = memref.load %arg4[%c70] : memref<192xf32, #tpu.memory_space<smem>>
    %737 = vector.broadcast %736 : f32 to vector<15x128xf32>
    %738 = arith.mulf %737, %120 : vector<15x128xf32>
    %739 = arith.addf %735, %738 : vector<15x128xf32>
    %c134 = arith.constant 134 : index
    %740 = memref.load %arg4[%c134] : memref<192xf32, #tpu.memory_space<smem>>
    %741 = vector.broadcast %740 : f32 to vector<15x128xf32>
    %742 = arith.mulf %741, %732 : vector<15x128xf32>
    %743 = arith.addf %739, %742 : vector<15x128xf32>
    %744 = arith.addf %644, %743 : vector<15x128xf32>
    %c14_37 = arith.constant 14 : index
    %745 = memref.load %arg4[%c14_37] : memref<192xf32, #tpu.memory_space<smem>>
    %746 = vector.broadcast %745 : f32 to vector<15x128xf32>
    %747 = arith.mulf %746, %730 : vector<15x128xf32>
    %c78 = arith.constant 78 : index
    %748 = memref.load %arg4[%c78] : memref<192xf32, #tpu.memory_space<smem>>
    %749 = vector.broadcast %748 : f32 to vector<15x128xf32>
    %750 = arith.mulf %749, %120 : vector<15x128xf32>
    %751 = arith.addf %747, %750 : vector<15x128xf32>
    %c142 = arith.constant 142 : index
    %752 = memref.load %arg4[%c142] : memref<192xf32, #tpu.memory_space<smem>>
    %753 = vector.broadcast %752 : f32 to vector<15x128xf32>
    %754 = arith.mulf %753, %732 : vector<15x128xf32>
    %755 = arith.addf %751, %754 : vector<15x128xf32>
    %756 = arith.addf %656, %755 : vector<15x128xf32>
    %c22_38 = arith.constant 22 : index
    %757 = memref.load %arg4[%c22_38] : memref<192xf32, #tpu.memory_space<smem>>
    %758 = vector.broadcast %757 : f32 to vector<15x128xf32>
    %759 = arith.mulf %758, %730 : vector<15x128xf32>
    %c86 = arith.constant 86 : index
    %760 = memref.load %arg4[%c86] : memref<192xf32, #tpu.memory_space<smem>>
    %761 = vector.broadcast %760 : f32 to vector<15x128xf32>
    %762 = arith.mulf %761, %120 : vector<15x128xf32>
    %763 = arith.addf %759, %762 : vector<15x128xf32>
    %c150 = arith.constant 150 : index
    %764 = memref.load %arg4[%c150] : memref<192xf32, #tpu.memory_space<smem>>
    %765 = vector.broadcast %764 : f32 to vector<15x128xf32>
    %766 = arith.mulf %765, %732 : vector<15x128xf32>
    %767 = arith.addf %763, %766 : vector<15x128xf32>
    %768 = arith.addf %668, %767 : vector<15x128xf32>
    %c30 = arith.constant 30 : index
    %769 = memref.load %arg4[%c30] : memref<192xf32, #tpu.memory_space<smem>>
    %770 = vector.broadcast %769 : f32 to vector<15x128xf32>
    %771 = arith.mulf %770, %730 : vector<15x128xf32>
    %c94 = arith.constant 94 : index
    %772 = memref.load %arg4[%c94] : memref<192xf32, #tpu.memory_space<smem>>
    %773 = vector.broadcast %772 : f32 to vector<15x128xf32>
    %774 = arith.mulf %773, %120 : vector<15x128xf32>
    %775 = arith.addf %771, %774 : vector<15x128xf32>
    %c158 = arith.constant 158 : index
    %776 = memref.load %arg4[%c158] : memref<192xf32, #tpu.memory_space<smem>>
    %777 = vector.broadcast %776 : f32 to vector<15x128xf32>
    %778 = arith.mulf %777, %732 : vector<15x128xf32>
    %779 = arith.addf %775, %778 : vector<15x128xf32>
    %780 = arith.addf %680, %779 : vector<15x128xf32>
    %c38 = arith.constant 38 : index
    %781 = memref.load %arg4[%c38] : memref<192xf32, #tpu.memory_space<smem>>
    %782 = vector.broadcast %781 : f32 to vector<15x128xf32>
    %783 = arith.mulf %782, %730 : vector<15x128xf32>
    %c102 = arith.constant 102 : index
    %784 = memref.load %arg4[%c102] : memref<192xf32, #tpu.memory_space<smem>>
    %785 = vector.broadcast %784 : f32 to vector<15x128xf32>
    %786 = arith.mulf %785, %120 : vector<15x128xf32>
    %787 = arith.addf %783, %786 : vector<15x128xf32>
    %c166 = arith.constant 166 : index
    %788 = memref.load %arg4[%c166] : memref<192xf32, #tpu.memory_space<smem>>
    %789 = vector.broadcast %788 : f32 to vector<15x128xf32>
    %790 = arith.mulf %789, %732 : vector<15x128xf32>
    %791 = arith.addf %787, %790 : vector<15x128xf32>
    %792 = arith.addf %692, %791 : vector<15x128xf32>
    %c46 = arith.constant 46 : index
    %793 = memref.load %arg4[%c46] : memref<192xf32, #tpu.memory_space<smem>>
    %794 = vector.broadcast %793 : f32 to vector<15x128xf32>
    %795 = arith.mulf %794, %730 : vector<15x128xf32>
    %c110 = arith.constant 110 : index
    %796 = memref.load %arg4[%c110] : memref<192xf32, #tpu.memory_space<smem>>
    %797 = vector.broadcast %796 : f32 to vector<15x128xf32>
    %798 = arith.mulf %797, %120 : vector<15x128xf32>
    %799 = arith.addf %795, %798 : vector<15x128xf32>
    %c174 = arith.constant 174 : index
    %800 = memref.load %arg4[%c174] : memref<192xf32, #tpu.memory_space<smem>>
    %801 = vector.broadcast %800 : f32 to vector<15x128xf32>
    %802 = arith.mulf %801, %732 : vector<15x128xf32>
    %803 = arith.addf %799, %802 : vector<15x128xf32>
    %804 = arith.addf %704, %803 : vector<15x128xf32>
    %c54 = arith.constant 54 : index
    %805 = memref.load %arg4[%c54] : memref<192xf32, #tpu.memory_space<smem>>
    %806 = vector.broadcast %805 : f32 to vector<15x128xf32>
    %807 = arith.mulf %806, %730 : vector<15x128xf32>
    %c118 = arith.constant 118 : index
    %808 = memref.load %arg4[%c118] : memref<192xf32, #tpu.memory_space<smem>>
    %809 = vector.broadcast %808 : f32 to vector<15x128xf32>
    %810 = arith.mulf %809, %120 : vector<15x128xf32>
    %811 = arith.addf %807, %810 : vector<15x128xf32>
    %c182 = arith.constant 182 : index
    %812 = memref.load %arg4[%c182] : memref<192xf32, #tpu.memory_space<smem>>
    %813 = vector.broadcast %812 : f32 to vector<15x128xf32>
    %814 = arith.mulf %813, %732 : vector<15x128xf32>
    %815 = arith.addf %811, %814 : vector<15x128xf32>
    %816 = arith.addf %716, %815 : vector<15x128xf32>
    %c62 = arith.constant 62 : index
    %817 = memref.load %arg4[%c62] : memref<192xf32, #tpu.memory_space<smem>>
    %818 = vector.broadcast %817 : f32 to vector<15x128xf32>
    %819 = arith.mulf %818, %730 : vector<15x128xf32>
    %c126 = arith.constant 126 : index
    %820 = memref.load %arg4[%c126] : memref<192xf32, #tpu.memory_space<smem>>
    %821 = vector.broadcast %820 : f32 to vector<15x128xf32>
    %822 = arith.mulf %821, %120 : vector<15x128xf32>
    %823 = arith.addf %819, %822 : vector<15x128xf32>
    %c190 = arith.constant 190 : index
    %824 = memref.load %arg4[%c190] : memref<192xf32, #tpu.memory_space<smem>>
    %825 = vector.broadcast %824 : f32 to vector<15x128xf32>
    %826 = arith.mulf %825, %732 : vector<15x128xf32>
    %827 = arith.addf %823, %826 : vector<15x128xf32>
    %828 = arith.addf %728, %827 : vector<15x128xf32>
    %829 = vector.extract_strided_slice %136 {offsets = [0, 0], sizes = [14, 128], strides = [1, 1]} : vector<15x128xf32> to vector<14x128xf32>
    %830 = tpu.concatenate %4, %829 in 0 : vector<1x128xf32>, vector<14x128xf32> -> vector<15x128xf32>
    %831 = vector.extract_strided_slice %136 {offsets = [1, 0], sizes = [14, 128], strides = [1, 1]} : vector<15x128xf32> to vector<14x128xf32>
    %832 = tpu.concatenate %831, %4 in 0 : vector<14x128xf32>, vector<1x128xf32> -> vector<15x128xf32>
    %c7_39 = arith.constant 7 : index
    %833 = memref.load %arg4[%c7_39] : memref<192xf32, #tpu.memory_space<smem>>
    %834 = vector.broadcast %833 : f32 to vector<15x128xf32>
    %835 = arith.mulf %834, %830 : vector<15x128xf32>
    %c71 = arith.constant 71 : index
    %836 = memref.load %arg4[%c71] : memref<192xf32, #tpu.memory_space<smem>>
    %837 = vector.broadcast %836 : f32 to vector<15x128xf32>
    %838 = arith.mulf %837, %136 : vector<15x128xf32>
    %839 = arith.addf %835, %838 : vector<15x128xf32>
    %c135 = arith.constant 135 : index
    %840 = memref.load %arg4[%c135] : memref<192xf32, #tpu.memory_space<smem>>
    %841 = vector.broadcast %840 : f32 to vector<15x128xf32>
    %842 = arith.mulf %841, %832 : vector<15x128xf32>
    %843 = arith.addf %839, %842 : vector<15x128xf32>
    %844 = arith.addf %744, %843 : vector<15x128xf32>
    %c15_40 = arith.constant 15 : index
    %845 = memref.load %arg4[%c15_40] : memref<192xf32, #tpu.memory_space<smem>>
    %846 = vector.broadcast %845 : f32 to vector<15x128xf32>
    %847 = arith.mulf %846, %830 : vector<15x128xf32>
    %c79 = arith.constant 79 : index
    %848 = memref.load %arg4[%c79] : memref<192xf32, #tpu.memory_space<smem>>
    %849 = vector.broadcast %848 : f32 to vector<15x128xf32>
    %850 = arith.mulf %849, %136 : vector<15x128xf32>
    %851 = arith.addf %847, %850 : vector<15x128xf32>
    %c143 = arith.constant 143 : index
    %852 = memref.load %arg4[%c143] : memref<192xf32, #tpu.memory_space<smem>>
    %853 = vector.broadcast %852 : f32 to vector<15x128xf32>
    %854 = arith.mulf %853, %832 : vector<15x128xf32>
    %855 = arith.addf %851, %854 : vector<15x128xf32>
    %856 = arith.addf %756, %855 : vector<15x128xf32>
    %c23_41 = arith.constant 23 : index
    %857 = memref.load %arg4[%c23_41] : memref<192xf32, #tpu.memory_space<smem>>
    %858 = vector.broadcast %857 : f32 to vector<15x128xf32>
    %859 = arith.mulf %858, %830 : vector<15x128xf32>
    %c87 = arith.constant 87 : index
    %860 = memref.load %arg4[%c87] : memref<192xf32, #tpu.memory_space<smem>>
    %861 = vector.broadcast %860 : f32 to vector<15x128xf32>
    %862 = arith.mulf %861, %136 : vector<15x128xf32>
    %863 = arith.addf %859, %862 : vector<15x128xf32>
    %c151 = arith.constant 151 : index
    %864 = memref.load %arg4[%c151] : memref<192xf32, #tpu.memory_space<smem>>
    %865 = vector.broadcast %864 : f32 to vector<15x128xf32>
    %866 = arith.mulf %865, %832 : vector<15x128xf32>
    %867 = arith.addf %863, %866 : vector<15x128xf32>
    %868 = arith.addf %768, %867 : vector<15x128xf32>
    %c31 = arith.constant 31 : index
    %869 = memref.load %arg4[%c31] : memref<192xf32, #tpu.memory_space<smem>>
    %870 = vector.broadcast %869 : f32 to vector<15x128xf32>
    %871 = arith.mulf %870, %830 : vector<15x128xf32>
    %c95 = arith.constant 95 : index
    %872 = memref.load %arg4[%c95] : memref<192xf32, #tpu.memory_space<smem>>
    %873 = vector.broadcast %872 : f32 to vector<15x128xf32>
    %874 = arith.mulf %873, %136 : vector<15x128xf32>
    %875 = arith.addf %871, %874 : vector<15x128xf32>
    %c159 = arith.constant 159 : index
    %876 = memref.load %arg4[%c159] : memref<192xf32, #tpu.memory_space<smem>>
    %877 = vector.broadcast %876 : f32 to vector<15x128xf32>
    %878 = arith.mulf %877, %832 : vector<15x128xf32>
    %879 = arith.addf %875, %878 : vector<15x128xf32>
    %880 = arith.addf %780, %879 : vector<15x128xf32>
    %c39 = arith.constant 39 : index
    %881 = memref.load %arg4[%c39] : memref<192xf32, #tpu.memory_space<smem>>
    %882 = vector.broadcast %881 : f32 to vector<15x128xf32>
    %883 = arith.mulf %882, %830 : vector<15x128xf32>
    %c103 = arith.constant 103 : index
    %884 = memref.load %arg4[%c103] : memref<192xf32, #tpu.memory_space<smem>>
    %885 = vector.broadcast %884 : f32 to vector<15x128xf32>
    %886 = arith.mulf %885, %136 : vector<15x128xf32>
    %887 = arith.addf %883, %886 : vector<15x128xf32>
    %c167 = arith.constant 167 : index
    %888 = memref.load %arg4[%c167] : memref<192xf32, #tpu.memory_space<smem>>
    %889 = vector.broadcast %888 : f32 to vector<15x128xf32>
    %890 = arith.mulf %889, %832 : vector<15x128xf32>
    %891 = arith.addf %887, %890 : vector<15x128xf32>
    %892 = arith.addf %792, %891 : vector<15x128xf32>
    %c47 = arith.constant 47 : index
    %893 = memref.load %arg4[%c47] : memref<192xf32, #tpu.memory_space<smem>>
    %894 = vector.broadcast %893 : f32 to vector<15x128xf32>
    %895 = arith.mulf %894, %830 : vector<15x128xf32>
    %c111 = arith.constant 111 : index
    %896 = memref.load %arg4[%c111] : memref<192xf32, #tpu.memory_space<smem>>
    %897 = vector.broadcast %896 : f32 to vector<15x128xf32>
    %898 = arith.mulf %897, %136 : vector<15x128xf32>
    %899 = arith.addf %895, %898 : vector<15x128xf32>
    %c175 = arith.constant 175 : index
    %900 = memref.load %arg4[%c175] : memref<192xf32, #tpu.memory_space<smem>>
    %901 = vector.broadcast %900 : f32 to vector<15x128xf32>
    %902 = arith.mulf %901, %832 : vector<15x128xf32>
    %903 = arith.addf %899, %902 : vector<15x128xf32>
    %904 = arith.addf %804, %903 : vector<15x128xf32>
    %c55 = arith.constant 55 : index
    %905 = memref.load %arg4[%c55] : memref<192xf32, #tpu.memory_space<smem>>
    %906 = vector.broadcast %905 : f32 to vector<15x128xf32>
    %907 = arith.mulf %906, %830 : vector<15x128xf32>
    %c119 = arith.constant 119 : index
    %908 = memref.load %arg4[%c119] : memref<192xf32, #tpu.memory_space<smem>>
    %909 = vector.broadcast %908 : f32 to vector<15x128xf32>
    %910 = arith.mulf %909, %136 : vector<15x128xf32>
    %911 = arith.addf %907, %910 : vector<15x128xf32>
    %c183 = arith.constant 183 : index
    %912 = memref.load %arg4[%c183] : memref<192xf32, #tpu.memory_space<smem>>
    %913 = vector.broadcast %912 : f32 to vector<15x128xf32>
    %914 = arith.mulf %913, %832 : vector<15x128xf32>
    %915 = arith.addf %911, %914 : vector<15x128xf32>
    %916 = arith.addf %816, %915 : vector<15x128xf32>
    %c63 = arith.constant 63 : index
    %917 = memref.load %arg4[%c63] : memref<192xf32, #tpu.memory_space<smem>>
    %918 = vector.broadcast %917 : f32 to vector<15x128xf32>
    %919 = arith.mulf %918, %830 : vector<15x128xf32>
    %c127 = arith.constant 127 : index
    %920 = memref.load %arg4[%c127] : memref<192xf32, #tpu.memory_space<smem>>
    %921 = vector.broadcast %920 : f32 to vector<15x128xf32>
    %922 = arith.mulf %921, %136 : vector<15x128xf32>
    %923 = arith.addf %919, %922 : vector<15x128xf32>
    %c191 = arith.constant 191 : index
    %924 = memref.load %arg4[%c191] : memref<192xf32, #tpu.memory_space<smem>>
    %925 = vector.broadcast %924 : f32 to vector<15x128xf32>
    %926 = arith.mulf %925, %832 : vector<15x128xf32>
    %927 = arith.addf %923, %926 : vector<15x128xf32>
    %928 = arith.addf %828, %927 : vector<15x128xf32>
    %c0_42 = arith.constant 0 : index
    %929 = memref.load %arg5[%c0_42] : memref<8xf32, #tpu.memory_space<smem>>
    %930 = vector.broadcast %929 : f32 to vector<15x128xf32>
    %931 = arith.addf %844, %930 : vector<15x128xf32>
    %cst_43 = arith.constant 0.000000e+00 : f32
    %932 = vector.broadcast %cst_43 : f32 to vector<15x128xf32>
    %933 = arith.maximumf %931, %932 : vector<15x128xf32>
    %c1_44 = arith.constant 1 : index
    %934 = memref.load %arg5[%c1_44] : memref<8xf32, #tpu.memory_space<smem>>
    %935 = vector.broadcast %934 : f32 to vector<15x128xf32>
    %936 = arith.addf %856, %935 : vector<15x128xf32>
    %cst_45 = arith.constant 0.000000e+00 : f32
    %937 = vector.broadcast %cst_45 : f32 to vector<15x128xf32>
    %938 = arith.maximumf %936, %937 : vector<15x128xf32>
    %c2_46 = arith.constant 2 : index
    %939 = memref.load %arg5[%c2_46] : memref<8xf32, #tpu.memory_space<smem>>
    %940 = vector.broadcast %939 : f32 to vector<15x128xf32>
    %941 = arith.addf %868, %940 : vector<15x128xf32>
    %cst_47 = arith.constant 0.000000e+00 : f32
    %942 = vector.broadcast %cst_47 : f32 to vector<15x128xf32>
    %943 = arith.maximumf %941, %942 : vector<15x128xf32>
    %c3_48 = arith.constant 3 : index
    %944 = memref.load %arg5[%c3_48] : memref<8xf32, #tpu.memory_space<smem>>
    %945 = vector.broadcast %944 : f32 to vector<15x128xf32>
    %946 = arith.addf %880, %945 : vector<15x128xf32>
    %cst_49 = arith.constant 0.000000e+00 : f32
    %947 = vector.broadcast %cst_49 : f32 to vector<15x128xf32>
    %948 = arith.maximumf %946, %947 : vector<15x128xf32>
    %c4_50 = arith.constant 4 : index
    %949 = memref.load %arg5[%c4_50] : memref<8xf32, #tpu.memory_space<smem>>
    %950 = vector.broadcast %949 : f32 to vector<15x128xf32>
    %951 = arith.addf %892, %950 : vector<15x128xf32>
    %cst_51 = arith.constant 0.000000e+00 : f32
    %952 = vector.broadcast %cst_51 : f32 to vector<15x128xf32>
    %953 = arith.maximumf %951, %952 : vector<15x128xf32>
    %c5_52 = arith.constant 5 : index
    %954 = memref.load %arg5[%c5_52] : memref<8xf32, #tpu.memory_space<smem>>
    %955 = vector.broadcast %954 : f32 to vector<15x128xf32>
    %956 = arith.addf %904, %955 : vector<15x128xf32>
    %cst_53 = arith.constant 0.000000e+00 : f32
    %957 = vector.broadcast %cst_53 : f32 to vector<15x128xf32>
    %958 = arith.maximumf %956, %957 : vector<15x128xf32>
    %c6_54 = arith.constant 6 : index
    %959 = memref.load %arg5[%c6_54] : memref<8xf32, #tpu.memory_space<smem>>
    %960 = vector.broadcast %959 : f32 to vector<15x128xf32>
    %961 = arith.addf %916, %960 : vector<15x128xf32>
    %cst_55 = arith.constant 0.000000e+00 : f32
    %962 = vector.broadcast %cst_55 : f32 to vector<15x128xf32>
    %963 = arith.maximumf %961, %962 : vector<15x128xf32>
    %c7_56 = arith.constant 7 : index
    %964 = memref.load %arg5[%c7_56] : memref<8xf32, #tpu.memory_space<smem>>
    %965 = vector.broadcast %964 : f32 to vector<15x128xf32>
    %966 = arith.addf %928, %965 : vector<15x128xf32>
    %cst_57 = arith.constant 0.000000e+00 : f32
    %967 = vector.broadcast %cst_57 : f32 to vector<15x128xf32>
    %968 = arith.maximumf %966, %967 : vector<15x128xf32>
    %969 = tpu.concatenate %933, %938, %943, %948, %953, %958, %963, %968 in 0 : vector<15x128xf32>, vector<15x128xf32>, vector<15x128xf32>, vector<15x128xf32>, vector<15x128xf32>, vector<15x128xf32>, vector<15x128xf32>, vector<15x128xf32> -> vector<120x128xf32>
    %970 = arith.truncf %969 : vector<120x128xf32> to vector<120x128xbf16>
    %c0_58 = arith.constant 0 : index
    %c0_59 = arith.constant 0 : index
    %971 = vector.load %arg6[%c0_58, %c0_59] : memref<24x120xbf16, #tpu.memory_space<vmem>>, vector<24x120xbf16>
    %cst_60 = arith.constant dense<0.000000e+00> : vector<24x128xf32>
    %972 = tpu.matmul %971, %970, %cst_60 {dimension_numbers = #tpu.dot_dimension_numbers<[1], [0], [0], [1], [0, 0, 1, 1], [], []>} : vector<24x120xbf16>, vector<120x128xbf16>, vector<24x128xf32> -> vector<24x128xf32>
    %c0_61 = arith.constant 0 : index
    %c0_62 = arith.constant 0 : index
    %973 = vector.load %arg7[%c0_61, %c0_62] : memref<24x1xf32, #tpu.memory_space<vmem>>, vector<24x1xf32>
    %974 = vector.broadcast %973 : vector<24x1xf32> to vector<24x128xf32>
    %975 = arith.addf %972, %974 : vector<24x128xf32>
    %976 = vector.broadcast %1 : vector<1x128xf32> to vector<24x128xf32>
    %977 = arith.addf %975, %976 : vector<24x128xf32>
    %c0_63 = arith.constant 0 : index
    %c0_64 = arith.constant 0 : index
    %978 = vector.load %arg8[%c0_63, %c0_64] : memref<24x128xf32, #tpu.memory_space<vmem>>, vector<24x128xf32>
    tpu.vector_store %arg8[%c0_63, %c0_64], %977 {strides = array<i32>} : memref<24x128xf32, #tpu.memory_space<vmem>>, vector<24x128xf32>,
    return
  }
  func.func @transform_0(%arg0: i32) -> (i32, i32) {
    %c0_i32 = arith.constant 0 : i32
    %c0_i32_0 = arith.constant 0 : i32
    return %c0_i32, %arg0 : i32, i32
  }
  func.func @transform_1(%arg0: i32) -> i32 {
    %c0_i32 = arith.constant 0 : i32
    %c0_i32_0 = arith.constant 0 : i32
    return %c0_i32 : i32
  }
  func.func @transform_2(%arg0: i32) -> i32 {
    %c0_i32 = arith.constant 0 : i32
    %c0_i32_0 = arith.constant 0 : i32
    return %c0_i32 : i32
  }
  func.func @transform_3(%arg0: i32) -> i32 {
    %c0_i32 = arith.constant 0 : i32
    %c0_i32_0 = arith.constant 0 : i32
    return %c0_i32 : i32
  }
  func.func @transform_4(%arg0: i32) -> i32 {
    %c0_i32 = arith.constant 0 : i32
    %c0_i32_0 = arith.constant 0 : i32
    return %c0_i32 : i32
  }
  func.func @transform_5(%arg0: i32) -> (i32, i32) {
    %c0_i32 = arith.constant 0 : i32
    %c0_i32_0 = arith.constant 0 : i32
    %c0_i32_1 = arith.constant 0 : i32
    return %c0_i32, %c0_i32_0 : i32, i32
  }
  func.func @transform_6(%arg0: i32) -> (i32, i32) {
    %c0_i32 = arith.constant 0 : i32
    %c0_i32_0 = arith.constant 0 : i32
    %c0_i32_1 = arith.constant 0 : i32
    return %c0_i32, %c0_i32_0 : i32, i32
  }
  func.func @transform_7(%arg0: i32) -> (i32, i32) {
    %c0_i32 = arith.constant 0 : i32
    %c0_i32_0 = arith.constant 0 : i32
    return %c0_i32, %arg0 : i32, i32
  }
}

</mosaic_0001>

<llo_original>
// kernel: tpu_custom_call.1
$region0: #{tpu_custom_call.1}
  #allocation0 [shape = 'u32[]', space=smem, size = 0x4, offset = 0x4, fixed_abs, tag = 'smem constant byte address 0x4 - core index']
  #allocation1 [shape = 'u32[72,128]{1,0:T(1,128)}', space=vmem, size = 0x9000, scoped, tag = 'internal scratch']
  %s0 = inlined_call_operand.vmem [shape: f32[15,128], index: 0, kind: input, shape index: {}]
  %s1 = inlined_call_operand.hbm [shape: f32[24], index: 1, kind: input, shape index: {}]
  %s2 = inlined_call_operand.hbm [shape: f32[8], index: 2, kind: input, shape index: {}]
  %s3 = inlined_call_operand.hbm [shape: f32[192], index: 3, kind: input, shape index: {}]
  %s4 = inlined_call_operand.hbm [shape: f32[8], index: 4, kind: input, shape index: {}]
  %s5 = inlined_call_operand.vmem [shape: bf16[24,120], index: 5, kind: input, shape index: {}]
  %s6 = inlined_call_operand.vmem [shape: f32[24,1], index: 6, kind: input, shape index: {}]
  %s7 = inlined_call_operand.hbm [shape: f32[24,128], index: 7, kind: output, shape index: {}]
  %s8 = sld [smem:[#allocation0]]
  $region54: #{tpu_custom_call.1} parent=0
    _
  %s10 = ssub.s32 1, %s8
  %s11 = scalar_select 0, %s10, %s8
  $region1: #{tpu_custom_call.1} parent=0
    #allocation2 [shape = 'u8[512]{0}', space=smem, size = 0x200, scoped, tag = 'input window, operand 1, single buffered']
    #allocation3 [shape = 's32[1]{0}', space=sflag, size = 0x4, scoped, tag = 'scoped memory for tpu_custom_call.1']
    #allocation4 [shape = 's32[1]{0}', space=sflag, size = 0x4, scoped, tag = 'scoped memory for tpu_custom_call.1']
    #allocation5 [shape = 'u8[512]{0}', space=smem, size = 0x200, scoped, tag = 'input window, operand 2, single buffered']
    #allocation6 [shape = 's32[1]{0}', space=sflag, size = 0x4, scoped, tag = 'scoped memory for tpu_custom_call.1']
    #allocation7 [shape = 'u8[1024]{0}', space=smem, size = 0x400, scoped, tag = 'input window, operand 3, single buffered']
    #allocation8 [shape = 'u8[512]{0}', space=smem, size = 0x200, scoped, tag = 'input window, operand 4, single buffered']
    #allocation9 [shape = 's32[1]{0}', space=sflag, size = 0x4, scoped, tag = 'scoped memory for tpu_custom_call.1']
    #allocation10 [shape = 'u8[12288]{0}', space=vmem, size = 0x3000, scoped, tag = 'output window, operand 0, single buffered']
    %12 = vsyncpa [#allocation4], 0
    %13 = vsyncpa [#allocation6], 0
    %14 = vsyncpa [#allocation9], 0
    %15 = vsyncpa [#allocation3], 0
    // Predicated region
    $region2: #{tpu_custom_call.1} parent=1 // pred_check
      _
    $region3: #{tpu_custom_call.1} parent=1 // pred_check_branch
      %17 = sbr.rel (0) target = $region5
    $region4: #{tpu_custom_call.1} parent=1 // pred_region
      _
    $region5: #{tpu_custom_call.1} parent=1 // pred_fallthru
      _
    // Predicated region
    $region6: #{tpu_custom_call.1} parent=1 // pred_check
      _
    $region7: #{tpu_custom_call.1} parent=1 // pred_check_branch
      %19 = sbr.rel (0) target = $region9
    $region8: #{tpu_custom_call.1} parent=1 // pred_region
      %21 = vsyncadd [#allocation4], 0
      %s23 = sshll.u32 %s1, 4
      %s24 = int_to_ptr.hbm [resolvable:$true] %s23
      %26 = dma.hbm_to_smem %s24, 16, [#allocation2], [#allocation4]
    $region9: #{tpu_custom_call.1} parent=1 // pred_fallthru
      _
    // Predicated region
    $region10: #{tpu_custom_call.1} parent=1 // pred_check
      _
    $region11: #{tpu_custom_call.1} parent=1 // pred_check_branch
      %28 = sbr.rel (0) target = $region13
    $region12: #{tpu_custom_call.1} parent=1 // pred_region
      %30 = vsyncadd [#allocation6], 0
      %s32 = sshll.u32 %s2, 4
      %s33 = int_to_ptr.hbm [resolvable:$true] %s32
      %35 = dma.hbm_to_smem %s33, 16, [#allocation5], [#allocation6]
    $region13: #{tpu_custom_call.1} parent=1 // pred_fallthru
      _
    // Predicated region
    $region14: #{tpu_custom_call.1} parent=1 // pred_check
      _
    $region15: #{tpu_custom_call.1} parent=1 // pred_check_branch
      %37 = sbr.rel (0) target = $region17
    $region16: #{tpu_custom_call.1} parent=1 // pred_region
      %39 = vsyncadd [#allocation6], 0
      %s41 = sshll.u32 %s3, 4
      %s42 = int_to_ptr.hbm [resolvable:$true] %s41
      %44 = dma.hbm_to_smem %s42, 32, [#allocation7], [#allocation6]
    $region17: #{tpu_custom_call.1} parent=1 // pred_fallthru
      _
    // Predicated region
    $region18: #{tpu_custom_call.1} parent=1 // pred_check
      _
    $region19: #{tpu_custom_call.1} parent=1 // pred_check_branch
      %46 = sbr.rel (0) target = $region21
    $region20: #{tpu_custom_call.1} parent=1 // pred_region
      %48 = vsyncadd [#allocation9], 0
      %s50 = sshll.u32 %s4, 4
      %s51 = int_to_ptr.hbm [resolvable:$true] %s50
      %53 = dma.hbm_to_smem %s51, 16, [#allocation8], [#allocation9]
    $region21: #{tpu_custom_call.1} parent=1 // pred_fallthru
      _
    // Predicated region
    $region22: #{tpu_custom_call.1} parent=1 // pred_check
      _
    $region23: #{tpu_custom_call.1} parent=1 // pred_check_branch
      %55 = sbr.rel (0) target = $region25
    $region24: #{tpu_custom_call.1} parent=1 // pred_region
      _
    $region25: #{tpu_custom_call.1} parent=1 // pred_fallthru
      _
    // Predicated region
    $region26: #{tpu_custom_call.1} parent=1 // pred_check
      _
    $region27: #{tpu_custom_call.1} parent=1 // pred_check_branch
      %57 = sbr.rel (0) target = $region29
    $region28: #{tpu_custom_call.1} parent=1 // pred_region
      _
    $region29: #{tpu_custom_call.1} parent=1 // pred_fallthru
      _
    // Predicated region
    $region30: #{tpu_custom_call.1} parent=1 // pred_check
      _
    $region31: #{tpu_custom_call.1} parent=1 // pred_check_branch
      %59 = sbr.rel (0) target = $region33
    $region32: #{tpu_custom_call.1} parent=1 // pred_region
      %61 = dma.done [#allocation4], 16
    $region33: #{tpu_custom_call.1} parent=1 // pred_fallthru
      _
    // Predicated region
    $region34: #{tpu_custom_call.1} parent=1 // pred_check
      _
    $region35: #{tpu_custom_call.1} parent=1 // pred_check_branch
      %63 = sbr.rel (0) target = $region37
    $region36: #{tpu_custom_call.1} parent=1 // pred_region
      %65 = dma.done [#allocation6], 16
    $region37: #{tpu_custom_call.1} parent=1 // pred_fallthru
      _
    // Predicated region
    $region38: #{tpu_custom_call.1} parent=1 // pred_check
      _
    $region39: #{tpu_custom_call.1} parent=1 // pred_check_branch
      %67 = sbr.rel (0) target = $region41
    $region40: #{tpu_custom_call.1} parent=1 // pred_region
      %69 = dma.done [#allocation6], 32
    $region41: #{tpu_custom_call.1} parent=1 // pred_fallthru
      _
    // Predicated region
    $region42: #{tpu_custom_call.1} parent=1 // pred_check
      _
    $region43: #{tpu_custom_call.1} parent=1 // pred_check_branch
      %71 = sbr.rel (0) target = $region45
    $region44: #{tpu_custom_call.1} parent=1 // pred_region
      %73 = dma.done [#allocation9], 16
    $region45: #{tpu_custom_call.1} parent=1 // pred_fallthru
      _
    %74 = sfence
    %v75 = vld [vmem:[%s0] sm:$0xff]
    %v76 = vld [vmem:[%s0 + $0x8] sm:$0x7f]
    %v77 = vperm.slane %v76, 6
    %v78 = vsub.f32 %v75, %v77
    %v79 = vsub.f32 %v76, %v77
    %vm82 = vcmask 1040384
    %v83 = vrot.slane %v78, 7
    %v84 = vrot.slane %v79, 7
    %v85 = vsel %vm82, %v83, %v84
    %v88 = vsel %vm82, 0.0, %v83
    %vm89 = vcmask 1046528
    %v90 = vrot.slane %v78, 1
    %v91 = vrot.slane %v79, 1
    %v92 = vsel %vm89, %v90, %v91
    %vm95 = vcmask 1045504
    %v96 = vsel %vm95, %v91, 0.0
    %s97 = sld [smem:[#allocation2]]
    %v98 = vstv %s97
    %v99 = vmul.f32 %v98, %v88
    %v100 = vmul.f32 %v98, %v85
    %s101 = sld [smem:[#allocation2 + $0x8]]
    %v102 = vstv %s101
    %v103 = vmul.f32 %v102, %v78
    %v104 = vmul.f32 %v102, %v79
    %v105 = vadd.f32 %v99, %v103
    %v106 = vadd.f32 %v100, %v104
    %s107 = sld [smem:[#allocation2 + $0x10]]
    %v108 = vstv %s107
    %v109 = vmul.f32 %v108, %v92
    %v110 = vmul.f32 %v108, %v96
    %v111 = vadd.f32 %v105, %v109
    %v112 = vadd.f32 %v106, %v110
    %s113 = sld [smem:[#allocation5]]
    %v114 = vstv %s113
    %v115 = vadd.f32 %v111, %v114
    %v116 = vadd.f32 %v112, %v114
    %v117 = vmax.f32 %v115, 0.0
    %v118 = vmax.f32 %v116, 0.0
    %s119 = sld [smem:[#allocation2 + $0x1]]
    %v120 = vstv %s119
    %v121 = vmul.f32 %v120, %v88
    %v122 = vmul.f32 %v120, %v85
    %s123 = sld [smem:[#allocation2 + $0x9]]
    %v124 = vstv %s123
    %v125 = vmul.f32 %v124, %v78
    %v126 = vmul.f32 %v124, %v79
    %v127 = vadd.f32 %v121, %v125
    %v128 = vadd.f32 %v122, %v126
    %s129 = sld [smem:[#allocation2 + $0x11]]
    %v130 = vstv %s129
    %v131 = vmul.f32 %v130, %v92
    %v132 = vmul.f32 %v130, %v96
    %v133 = vadd.f32 %v127, %v131
    %v134 = vadd.f32 %v128, %v132
    %s135 = sld [smem:[#allocation5 + $0x1]]
    %v136 = vstv %s135
    %v137 = vadd.f32 %v133, %v136
    %v138 = vadd.f32 %v134, %v136
    %v139 = vmax.f32 %v137, 0.0
    %v140 = vmax.f32 %v138, 0.0
    %s141 = sld [smem:[#allocation2 + $0x2]]
    %v142 = vstv %s141
    %v143 = vmul.f32 %v142, %v88
    %v144 = vmul.f32 %v142, %v85
    %s145 = sld [smem:[#allocation2 + $0xa]]
    %v146 = vstv %s145
    %v147 = vmul.f32 %v146, %v78
    %v148 = vmul.f32 %v146, %v79
    %v149 = vadd.f32 %v143, %v147
    %v150 = vadd.f32 %v144, %v148
    %s151 = sld [smem:[#allocation2 + $0x12]]
    %v152 = vstv %s151
    %v153 = vmul.f32 %v152, %v92
    %v154 = vmul.f32 %v152, %v96
    %v155 = vadd.f32 %v149, %v153
    %v156 = vadd.f32 %v150, %v154
    %s157 = sld [smem:[#allocation5 + $0x2]]
    %v158 = vstv %s157
    %v159 = vadd.f32 %v155, %v158
    %v160 = vadd.f32 %v156, %v158
    %v161 = vmax.f32 %v159, 0.0
    %v162 = vmax.f32 %v160, 0.0
    %s163 = sld [smem:[#allocation2 + $0x3]]
    %v164 = vstv %s163
    %v165 = vmul.f32 %v164, %v88
    %v166 = vmul.f32 %v164, %v85
    %s167 = sld [smem:[#allocation2 + $0xb]]
    %v168 = vstv %s167
    %v169 = vmul.f32 %v168, %v78
    %v170 = vmul.f32 %v168, %v79
    %v171 = vadd.f32 %v165, %v169
    %v172 = vadd.f32 %v166, %v170
    %s173 = sld [smem:[#allocation2 + $0x13]]
    %v174 = vstv %s173
    %v175 = vmul.f32 %v174, %v92
    %v176 = vmul.f32 %v174, %v96
    %v177 = vadd.f32 %v171, %v175
    %v178 = vadd.f32 %v172, %v176
    %s179 = sld [smem:[#allocation5 + $0x3]]
    %v180 = vstv %s179
    %v181 = vadd.f32 %v177, %v180
    %v182 = vadd.f32 %v178, %v180
    %v183 = vmax.f32 %v181, 0.0
    %v184 = vmax.f32 %v182, 0.0
    %s185 = sld [smem:[#allocation2 + $0x4]]
    %v186 = vstv %s185
    %v187 = vmul.f32 %v186, %v88
    %v188 = vmul.f32 %v186, %v85
    %s189 = sld [smem:[#allocation2 + $0xc]]
    %v190 = vstv %s189
    %v191 = vmul.f32 %v190, %v78
    %v192 = vmul.f32 %v190, %v79
    %v193 = vadd.f32 %v187, %v191
    %v194 = vadd.f32 %v188, %v192
    %s195 = sld [smem:[#allocation2 + $0x14]]
    %v196 = vstv %s195
    %v197 = vmul.f32 %v196, %v92
    %v198 = vmul.f32 %v196, %v96
    %v199 = vadd.f32 %v193, %v197
    %v200 = vadd.f32 %v194, %v198
    %s201 = sld [smem:[#allocation5 + $0x4]]
    %v202 = vstv %s201
    %v203 = vadd.f32 %v199, %v202
    %v204 = vadd.f32 %v200, %v202
    %v205 = vmax.f32 %v203, 0.0
    %v206 = vmax.f32 %v204, 0.0
    %s207 = sld [smem:[#allocation2 + $0x5]]
    %v208 = vstv %s207
    %v209 = vmul.f32 %v208, %v88
    %v210 = vmul.f32 %v208, %v85
    %s211 = sld [smem:[#allocation2 + $0xd]]
    %v212 = vstv %s211
    %v213 = vmul.f32 %v212, %v78
    %v214 = vmul.f32 %v212, %v79
    %v215 = vadd.f32 %v209, %v213
    %v216 = vadd.f32 %v210, %v214
    %s217 = sld [smem:[#allocation2 + $0x15]]
    %v218 = vstv %s217
    %v219 = vmul.f32 %v218, %v92
    %v220 = vmul.f32 %v218, %v96
    %v221 = vadd.f32 %v215, %v219
    %v222 = vadd.f32 %v216, %v220
    %s223 = sld [smem:[#allocation5 + $0x5]]
    %v224 = vstv %s223
    %v225 = vadd.f32 %v221, %v224
    %v226 = vadd.f32 %v222, %v224
    %v227 = vmax.f32 %v225, 0.0
    %v228 = vmax.f32 %v226, 0.0
    %s229 = sld [smem:[#allocation2 + $0x6]]
    %v230 = vstv %s229
    %v231 = vmul.f32 %v230, %v88
    %v232 = vmul.f32 %v230, %v85
    %s233 = sld [smem:[#allocation2 + $0xe]]
    %v234 = vstv %s233
    %v235 = vmul.f32 %v234, %v78
    %v236 = vmul.f32 %v234, %v79
    %v237 = vadd.f32 %v231, %v235
    %v238 = vadd.f32 %v232, %v236
    %s239 = sld [smem:[#allocation2 + $0x16]]
    %v240 = vstv %s239
    %v241 = vmul.f32 %v240, %v92
    %v242 = vmul.f32 %v240, %v96
    %v243 = vadd.f32 %v237, %v241
    %v244 = vadd.f32 %v238, %v242
    %s245 = sld [smem:[#allocation5 + $0x6]]
    %v246 = vstv %s245
    %v247 = vadd.f32 %v243, %v246
    %v248 = vadd.f32 %v244, %v246
    %v249 = vmax.f32 %v247, 0.0
    %v250 = vmax.f32 %v248, 0.0
    %s251 = sld [smem:[#allocation2 + $0x7]]
    %v252 = vstv %s251
    %v253 = vmul.f32 %v252, %v88
    %v254 = vmul.f32 %v252, %v85
    %s255 = sld [smem:[#allocation2 + $0xf]]
    %v256 = vstv %s255
    %v257 = vmul.f32 %v256, %v78
    %v258 = vmul.f32 %v256, %v79
    %v259 = vadd.f32 %v253, %v257
    %v260 = vadd.f32 %v254, %v258
    %s261 = sld [smem:[#allocation2 + $0x17]]
    %v262 = vstv %s261
    %v263 = vmul.f32 %v262, %v92
    %v264 = vmul.f32 %v262, %v96
    %v265 = vadd.f32 %v259, %v263
    %v266 = vadd.f32 %v260, %v264
    %s267 = sld [smem:[#allocation5 + $0x7]]
    %v268 = vstv %s267
    %v269 = vadd.f32 %v265, %v268
    %v270 = vadd.f32 %v266, %v268
    %v271 = vmax.f32 %v269, 0.0
    %v272 = vmax.f32 %v270, 0.0
    %v275 = vrot.slane %v117, 7
    %v276 = vrot.slane %v118, 7
    %v277 = vsel %vm82, %v275, %v276
    %v280 = vsel %vm82, 0.0, %v275
    %v281 = vrot.slane %v117, 1
    %v282 = vrot.slane %v118, 1
    %v283 = vsel %vm89, %v281, %v282
    %v286 = vsel %vm95, %v282, 0.0
    %s287 = sld [smem:[#allocation7]]
    %v288 = vstv %s287
    %v289 = vmul.f32 %v288, %v280
    %v290 = vmul.f32 %v288, %v277
    %s291 = sld [smem:[#allocation7 + $0x40]]
    %v292 = vstv %s291
    %v293 = vmul.f32 %v292, %v117
    %v294 = vmul.f32 %v292, %v118
    %v295 = vadd.f32 %v289, %v293
    %v296 = vadd.f32 %v290, %v294
    %s297 = sld [smem:[#allocation7 + $0x80]]
    %v298 = vstv %s297
    %v299 = vmul.f32 %v298, %v283
    %v300 = vmul.f32 %v298, %v286
    %v301 = vadd.f32 %v295, %v299
    %v302 = vadd.f32 %v296, %v300
    %s303 = sld [smem:[#allocation7 + $0x8]]
    %v304 = vstv %s303
    %v305 = vmul.f32 %v304, %v280
    %v306 = vmul.f32 %v304, %v277
    %s307 = sld [smem:[#allocation7 + $0x48]]
    %v308 = vstv %s307
    %v309 = vmul.f32 %v308, %v117
    %v310 = vmul.f32 %v308, %v118
    %v311 = vadd.f32 %v305, %v309
    %v312 = vadd.f32 %v306, %v310
    %s313 = sld [smem:[#allocation7 + $0x88]]
    %v314 = vstv %s313
    %v315 = vmul.f32 %v314, %v283
    %v316 = vmul.f32 %v314, %v286
    %v317 = vadd.f32 %v311, %v315
    %v318 = vadd.f32 %v312, %v316
    %s319 = sld [smem:[#allocation7 + $0x10]]
    %v320 = vstv %s319
    %v321 = vmul.f32 %v320, %v280
    %v322 = vmul.f32 %v320, %v277
    %s323 = sld [smem:[#allocation7 + $0x50]]
    %v324 = vstv %s323
    %v325 = vmul.f32 %v324, %v117
    %v326 = vmul.f32 %v324, %v118
    %v327 = vadd.f32 %v321, %v325
    %v328 = vadd.f32 %v322, %v326
    %s329 = sld [smem:[#allocation7 + $0x90]]
    %v330 = vstv %s329
    %v331 = vmul.f32 %v330, %v283
    %v332 = vmul.f32 %v330, %v286
    %v333 = vadd.f32 %v327, %v331
    %v334 = vadd.f32 %v328, %v332
    %s335 = sld [smem:[#allocation7 + $0x18]]
    %v336 = vstv %s335
    %v337 = vmul.f32 %v336, %v280
    %v338 = vmul.f32 %v336, %v277
    %s339 = sld [smem:[#allocation7 + $0x58]]
    %v340 = vstv %s339
    %v341 = vmul.f32 %v340, %v117
    %v342 = vmul.f32 %v340, %v118
    %v343 = vadd.f32 %v337, %v341
    %v344 = vadd.f32 %v338, %v342
    %s345 = sld [smem:[#allocation7 + $0x98]]
    %v346 = vstv %s345
    %v347 = vmul.f32 %v346, %v283
    %v348 = vmul.f32 %v346, %v286
    %v349 = vadd.f32 %v343, %v347
    %v350 = vadd.f32 %v344, %v348
    %s351 = sld [smem:[#allocation7 + $0x20]]
    %v352 = vstv %s351
    %v353 = vmul.f32 %v352, %v280
    %v354 = vmul.f32 %v352, %v277
    %s355 = sld [smem:[#allocation7 + $0x60]]
    %v356 = vstv %s355
    %v357 = vmul.f32 %v356, %v117
    %v358 = vmul.f32 %v356, %v118
    %v359 = vadd.f32 %v353, %v357
    %v360 = vadd.f32 %v354, %v358
    %s361 = sld [smem:[#allocation7 + $0xa0]]
    %v362 = vstv %s361
    %v363 = vmul.f32 %v362, %v283
    %v364 = vmul.f32 %v362, %v286
    %v365 = vadd.f32 %v359, %v363
    %v366 = vadd.f32 %v360, %v364
    %s367 = sld [smem:[#allocation7 + $0x28]]
    %v368 = vstv %s367
    %v369 = vmul.f32 %v368, %v280
    %v370 = vmul.f32 %v368, %v277
    %s371 = sld [smem:[#allocation7 + $0x68]]
    %v372 = vstv %s371
    %v373 = vmul.f32 %v372, %v117
    %v374 = vmul.f32 %v372, %v118
    %v375 = vadd.f32 %v369, %v373
    %v376 = vadd.f32 %v370, %v374
    %s377 = sld [smem:[#allocation7 + $0xa8]]
    %v378 = vstv %s377
    %v379 = vmul.f32 %v378, %v283
    %v380 = vmul.f32 %v378, %v286
    %v381 = vadd.f32 %v375, %v379
    %v382 = vadd.f32 %v376, %v380
    %s383 = sld [smem:[#allocation7 + $0x30]]
    %v384 = vstv %s383
    %v385 = vmul.f32 %v384, %v280
    %v386 = vmul.f32 %v384, %v277
    %s387 = sld [smem:[#allocation7 + $0x70]]
    %v388 = vstv %s387
    %v389 = vmul.f32 %v388, %v117
    %v390 = vmul.f32 %v388, %v118
    %v391 = vadd.f32 %v385, %v389
    %v392 = vadd.f32 %v386, %v390
    %s393 = sld [smem:[#allocation7 + $0xb0]]
    %v394 = vstv %s393
    %v395 = vmul.f32 %v394, %v283
    %v396 = vmul.f32 %v394, %v286
    %v397 = vadd.f32 %v391, %v395
    %v398 = vadd.f32 %v392, %v396
    %s399 = sld [smem:[#allocation7 + $0x38]]
    %v400 = vstv %s399
    %v401 = vmul.f32 %v400, %v280
    %v402 = vmul.f32 %v400, %v277
    %s403 = sld [smem:[#allocation7 + $0x78]]
    %v404 = vstv %s403
    %v405 = vmul.f32 %v404, %v117
    %v406 = vmul.f32 %v404, %v118
    %v407 = vadd.f32 %v401, %v405
    %v408 = vadd.f32 %v402, %v406
    %s409 = sld [smem:[#allocation7 + $0xb8]]
    %v410 = vstv %s409
    %v411 = vmul.f32 %v410, %v283
    %v412 = vmul.f32 %v410, %v286
    %v413 = vadd.f32 %v407, %v411
    %v414 = vadd.f32 %v408, %v412
    %v417 = vrot.slane %v139, 7
    %v418 = vrot.slane %v140, 7
    %v419 = vsel %vm82, %v417, %v418
    %v422 = vsel %vm82, 0.0, %v417
    %v423 = vrot.slane %v139, 1
    %v424 = vrot.slane %v140, 1
    %v425 = vsel %vm89, %v423, %v424
    %v428 = vsel %vm95, %v424, 0.0
    %s429 = sld [smem:[#allocation7 + $0x1]]
    %v430 = vstv %s429
    %v431 = vmul.f32 %v430, %v422
    %v432 = vmul.f32 %v430, %v419
    %s433 = sld [smem:[#allocation7 + $0x41]]
    %v434 = vstv %s433
    %v435 = vmul.f32 %v434, %v139
    %v436 = vmul.f32 %v434, %v140
    %v437 = vadd.f32 %v431, %v435
    %v438 = vadd.f32 %v432, %v436
    %s439 = sld [smem:[#allocation7 + $0x81]]
    %v440 = vstv %s439
    %v441 = vmul.f32 %v440, %v425
    %v442 = vmul.f32 %v440, %v428
    %v443 = vadd.f32 %v437, %v441
    %v444 = vadd.f32 %v438, %v442
    %v445 = vadd.f32 %v301, %v443
    %v446 = vadd.f32 %v302, %v444
    %s447 = sld [smem:[#allocation7 + $0x9]]
    %v448 = vstv %s447
    %v449 = vmul.f32 %v448, %v422
    %v450 = vmul.f32 %v448, %v419
    %s451 = sld [smem:[#allocation7 + $0x49]]
    %v452 = vstv %s451
    %v453 = vmul.f32 %v452, %v139
    %v454 = vmul.f32 %v452, %v140
    %v455 = vadd.f32 %v449, %v453
    %v456 = vadd.f32 %v450, %v454
    %s457 = sld [smem:[#allocation7 + $0x89]]
    %v458 = vstv %s457
    %v459 = vmul.f32 %v458, %v425
    %v460 = vmul.f32 %v458, %v428
    %v461 = vadd.f32 %v455, %v459
    %v462 = vadd.f32 %v456, %v460
    %v463 = vadd.f32 %v317, %v461
    %v464 = vadd.f32 %v318, %v462
    %s465 = sld [smem:[#allocation7 + $0x11]]
    %v466 = vstv %s465
    %v467 = vmul.f32 %v466, %v422
    %v468 = vmul.f32 %v466, %v419
    %s469 = sld [smem:[#allocation7 + $0x51]]
    %v470 = vstv %s469
    %v471 = vmul.f32 %v470, %v139
    %v472 = vmul.f32 %v470, %v140
    %v473 = vadd.f32 %v467, %v471
    %v474 = vadd.f32 %v468, %v472
    %s475 = sld [smem:[#allocation7 + $0x91]]
    %v476 = vstv %s475
    %v477 = vmul.f32 %v476, %v425
    %v478 = vmul.f32 %v476, %v428
    %v479 = vadd.f32 %v473, %v477
    %v480 = vadd.f32 %v474, %v478
    %v481 = vadd.f32 %v333, %v479
    %v482 = vadd.f32 %v334, %v480
    %s483 = sld [smem:[#allocation7 + $0x19]]
    %v484 = vstv %s483
    %v485 = vmul.f32 %v484, %v422
    %v486 = vmul.f32 %v484, %v419
    %s487 = sld [smem:[#allocation7 + $0x59]]
    %v488 = vstv %s487
    %v489 = vmul.f32 %v488, %v139
    %v490 = vmul.f32 %v488, %v140
    %v491 = vadd.f32 %v485, %v489
    %v492 = vadd.f32 %v486, %v490
    %s493 = sld [smem:[#allocation7 + $0x99]]
    %v494 = vstv %s493
    %v495 = vmul.f32 %v494, %v425
    %v496 = vmul.f32 %v494, %v428
    %v497 = vadd.f32 %v491, %v495
    %v498 = vadd.f32 %v492, %v496
    %v499 = vadd.f32 %v349, %v497
    %v500 = vadd.f32 %v350, %v498
    %s501 = sld [smem:[#allocation7 + $0x21]]
    %v502 = vstv %s501
    %v503 = vmul.f32 %v502, %v422
    %v504 = vmul.f32 %v502, %v419
    %s505 = sld [smem:[#allocation7 + $0x61]]
    %v506 = vstv %s505
    %v507 = vmul.f32 %v506, %v139
    %v508 = vmul.f32 %v506, %v140
    %v509 = vadd.f32 %v503, %v507
    %v510 = vadd.f32 %v504, %v508
    %s511 = sld [smem:[#allocation7 + $0xa1]]
    %v512 = vstv %s511
    %v513 = vmul.f32 %v512, %v425
    %v514 = vmul.f32 %v512, %v428
    %v515 = vadd.f32 %v509, %v513
    %v516 = vadd.f32 %v510, %v514
    %v517 = vadd.f32 %v365, %v515
    %v518 = vadd.f32 %v366, %v516
    %s519 = sld [smem:[#allocation7 + $0x29]]
    %v520 = vstv %s519
    %v521 = vmul.f32 %v520, %v422
    %v522 = vmul.f32 %v520, %v419
    %s523 = sld [smem:[#allocation7 + $0x69]]
    %v524 = vstv %s523
    %v525 = vmul.f32 %v524, %v139
    %v526 = vmul.f32 %v524, %v140
    %v527 = vadd.f32 %v521, %v525
    %v528 = vadd.f32 %v522, %v526
    %s529 = sld [smem:[#allocation7 + $0xa9]]
    %v530 = vstv %s529
    %v531 = vmul.f32 %v530, %v425
    %v532 = vmul.f32 %v530, %v428
    %v533 = vadd.f32 %v527, %v531
    %v534 = vadd.f32 %v528, %v532
    %v535 = vadd.f32 %v381, %v533
    %v536 = vadd.f32 %v382, %v534
    %s537 = sld [smem:[#allocation7 + $0x31]]
    %v538 = vstv %s537
    %v539 = vmul.f32 %v538, %v422
    %v540 = vmul.f32 %v538, %v419
    %s541 = sld [smem:[#allocation7 + $0x71]]
    %v542 = vstv %s541
    %v543 = vmul.f32 %v542, %v139
    %v544 = vmul.f32 %v542, %v140
    %v545 = vadd.f32 %v539, %v543
    %v546 = vadd.f32 %v540, %v544
    %s547 = sld [smem:[#allocation7 + $0xb1]]
    %v548 = vstv %s547
    %v549 = vmul.f32 %v548, %v425
    %v550 = vmul.f32 %v548, %v428
    %v551 = vadd.f32 %v545, %v549
    %v552 = vadd.f32 %v546, %v550
    %v553 = vadd.f32 %v397, %v551
    %v554 = vadd.f32 %v398, %v552
    %s555 = sld [smem:[#allocation7 + $0x39]]
    %v556 = vstv %s555
    %v557 = vmul.f32 %v556, %v422
    %v558 = vmul.f32 %v556, %v419
    %s559 = sld [smem:[#allocation7 + $0x79]]
    %v560 = vstv %s559
    %v561 = vmul.f32 %v560, %v139
    %v562 = vmul.f32 %v560, %v140
    %v563 = vadd.f32 %v557, %v561
    %v564 = vadd.f32 %v558, %v562
    %s565 = sld [smem:[#allocation7 + $0xb9]]
    %v566 = vstv %s565
    %v567 = vmul.f32 %v566, %v425
    %v568 = vmul.f32 %v566, %v428
    %v569 = vadd.f32 %v563, %v567
    %v570 = vadd.f32 %v564, %v568
    %v571 = vadd.f32 %v413, %v569
    %v572 = vadd.f32 %v414, %v570
    %v575 = vrot.slane %v161, 7
    %v576 = vrot.slane %v162, 7
    %v577 = vsel %vm82, %v575, %v576
    %v580 = vsel %vm82, 0.0, %v575
    %v581 = vrot.slane %v161, 1
    %v582 = vrot.slane %v162, 1
    %v583 = vsel %vm89, %v581, %v582
    %v586 = vsel %vm95, %v582, 0.0
    %s587 = sld [smem:[#allocation7 + $0x2]]
    %v588 = vstv %s587
    %v589 = vmul.f32 %v588, %v580
    %v590 = vmul.f32 %v588, %v577
    %s591 = sld [smem:[#allocation7 + $0x42]]
    %v592 = vstv %s591
    %v593 = vmul.f32 %v592, %v161
    %v594 = vmul.f32 %v592, %v162
    %v595 = vadd.f32 %v589, %v593
    %v596 = vadd.f32 %v590, %v594
    %s597 = sld [smem:[#allocation7 + $0x82]]
    %v598 = vstv %s597
    %v599 = vmul.f32 %v598, %v583
    %v600 = vmul.f32 %v598, %v586
    %v601 = vadd.f32 %v595, %v599
    %v602 = vadd.f32 %v596, %v600
    %v603 = vadd.f32 %v445, %v601
    %v604 = vadd.f32 %v446, %v602
    %s605 = sld [smem:[#allocation7 + $0xa]]
    %v606 = vstv %s605
    %v607 = vmul.f32 %v606, %v580
    %v608 = vmul.f32 %v606, %v577
    %s609 = sld [smem:[#allocation7 + $0x4a]]
    %v610 = vstv %s609
    %v611 = vmul.f32 %v610, %v161
    %v612 = vmul.f32 %v610, %v162
    %v613 = vadd.f32 %v607, %v611
    %v614 = vadd.f32 %v608, %v612
    %s615 = sld [smem:[#allocation7 + $0x8a]]
    %v616 = vstv %s615
    %v617 = vmul.f32 %v616, %v583
    %v618 = vmul.f32 %v616, %v586
    %v619 = vadd.f32 %v613, %v617
    %v620 = vadd.f32 %v614, %v618
    %v621 = vadd.f32 %v463, %v619
    %v622 = vadd.f32 %v464, %v620
    %s623 = sld [smem:[#allocation7 + $0x12]]
    %v624 = vstv %s623
    %v625 = vmul.f32 %v624, %v580
    %v626 = vmul.f32 %v624, %v577
    %s627 = sld [smem:[#allocation7 + $0x52]]
    %v628 = vstv %s627
    %v629 = vmul.f32 %v628, %v161
    %v630 = vmul.f32 %v628, %v162
    %v631 = vadd.f32 %v625, %v629
    %v632 = vadd.f32 %v626, %v630
    %s633 = sld [smem:[#allocation7 + $0x92]]
    %v634 = vstv %s633
    %v635 = vmul.f32 %v634, %v583
    %v636 = vmul.f32 %v634, %v586
    %v637 = vadd.f32 %v631, %v635
    %v638 = vadd.f32 %v632, %v636
    %v639 = vadd.f32 %v481, %v637
    %v640 = vadd.f32 %v482, %v638
    %s641 = sld [smem:[#allocation7 + $0x1a]]
    %v642 = vstv %s641
    %v643 = vmul.f32 %v642, %v580
    %v644 = vmul.f32 %v642, %v577
    %s645 = sld [smem:[#allocation7 + $0x5a]]
    %v646 = vstv %s645
    %v647 = vmul.f32 %v646, %v161
    %v648 = vmul.f32 %v646, %v162
    %v649 = vadd.f32 %v643, %v647
    %v650 = vadd.f32 %v644, %v648
    %s651 = sld [smem:[#allocation7 + $0x9a]]
    %v652 = vstv %s651
    %v653 = vmul.f32 %v652, %v583
    %v654 = vmul.f32 %v652, %v586
    %v655 = vadd.f32 %v649, %v653
    %v656 = vadd.f32 %v650, %v654
    %v657 = vadd.f32 %v499, %v655
    %v658 = vadd.f32 %v500, %v656
    %s659 = sld [smem:[#allocation7 + $0x22]]
    %v660 = vstv %s659
    %v661 = vmul.f32 %v660, %v580
    %v662 = vmul.f32 %v660, %v577
    %s663 = sld [smem:[#allocation7 + $0x62]]
    %v664 = vstv %s663
    %v665 = vmul.f32 %v664, %v161
    %v666 = vmul.f32 %v664, %v162
    %v667 = vadd.f32 %v661, %v665
    %v668 = vadd.f32 %v662, %v666
    %s669 = sld [smem:[#allocation7 + $0xa2]]
    %v670 = vstv %s669
    %v671 = vmul.f32 %v670, %v583
    %v672 = vmul.f32 %v670, %v586
    %v673 = vadd.f32 %v667, %v671
    %v674 = vadd.f32 %v668, %v672
    %v675 = vadd.f32 %v517, %v673
    %v676 = vadd.f32 %v518, %v674
    %s677 = sld [smem:[#allocation7 + $0x2a]]
    %v678 = vstv %s677
    %v679 = vmul.f32 %v678, %v580
    %v680 = vmul.f32 %v678, %v577
    %s681 = sld [smem:[#allocation7 + $0x6a]]
    %v682 = vstv %s681
    %v683 = vmul.f32 %v682, %v161
    %v684 = vmul.f32 %v682, %v162
    %v685 = vadd.f32 %v679, %v683
    %v686 = vadd.f32 %v680, %v684
    %s687 = sld [smem:[#allocation7 + $0xaa]]
    %v688 = vstv %s687
    %v689 = vmul.f32 %v688, %v583
    %v690 = vmul.f32 %v688, %v586
    %v691 = vadd.f32 %v685, %v689
    %v692 = vadd.f32 %v686, %v690
    %v693 = vadd.f32 %v535, %v691
    %v694 = vadd.f32 %v536, %v692
    %s695 = sld [smem:[#allocation7 + $0x32]]
    %v696 = vstv %s695
    %v697 = vmul.f32 %v696, %v580
    %v698 = vmul.f32 %v696, %v577
    %s699 = sld [smem:[#allocation7 + $0x72]]
    %v700 = vstv %s699
    %v701 = vmul.f32 %v700, %v161
    %v702 = vmul.f32 %v700, %v162
    %v703 = vadd.f32 %v697, %v701
    %v704 = vadd.f32 %v698, %v702
    %s705 = sld [smem:[#allocation7 + $0xb2]]
    %v706 = vstv %s705
    %v707 = vmul.f32 %v706, %v583
    %v708 = vmul.f32 %v706, %v586
    %v709 = vadd.f32 %v703, %v707
    %v710 = vadd.f32 %v704, %v708
    %v711 = vadd.f32 %v553, %v709
    %v712 = vadd.f32 %v554, %v710
    %s713 = sld [smem:[#allocation7 + $0x3a]]
    %v714 = vstv %s713
    %v715 = vmul.f32 %v714, %v580
    %v716 = vmul.f32 %v714, %v577
    %s717 = sld [smem:[#allocation7 + $0x7a]]
    %v718 = vstv %s717
    %v719 = vmul.f32 %v718, %v161
    %v720 = vmul.f32 %v718, %v162
    %v721 = vadd.f32 %v715, %v719
    %v722 = vadd.f32 %v716, %v720
    %s723 = sld [smem:[#allocation7 + $0xba]]
    %v724 = vstv %s723
    %v725 = vmul.f32 %v724, %v583
    %v726 = vmul.f32 %v724, %v586
    %v727 = vadd.f32 %v721, %v725
    %v728 = vadd.f32 %v722, %v726
    %v729 = vadd.f32 %v571, %v727
    %v730 = vadd.f32 %v572, %v728
    %v733 = vrot.slane %v183, 7
    %v734 = vrot.slane %v184, 7
    %v735 = vsel %vm82, %v733, %v734
    %v738 = vsel %vm82, 0.0, %v733
    %v739 = vrot.slane %v183, 1
    %v740 = vrot.slane %v184, 1
    %v741 = vsel %vm89, %v739, %v740
    %v744 = vsel %vm95, %v740, 0.0
    %s745 = sld [smem:[#allocation7 + $0x3]]
    %v746 = vstv %s745
    %v747 = vmul.f32 %v746, %v738
    %v748 = vmul.f32 %v746, %v735
    %s749 = sld [smem:[#allocation7 + $0x43]]
    %v750 = vstv %s749
    %v751 = vmul.f32 %v750, %v183
    %v752 = vmul.f32 %v750, %v184
    %v753 = vadd.f32 %v747, %v751
    %v754 = vadd.f32 %v748, %v752
    %s755 = sld [smem:[#allocation7 + $0x83]]
    %v756 = vstv %s755
    %v757 = vmul.f32 %v756, %v741
    %v758 = vmul.f32 %v756, %v744
    %v759 = vadd.f32 %v753, %v757
    %v760 = vadd.f32 %v754, %v758
    %v761 = vadd.f32 %v603, %v759
    %v762 = vadd.f32 %v604, %v760
    %s763 = sld [smem:[#allocation7 + $0xb]]
    %v764 = vstv %s763
    %v765 = vmul.f32 %v764, %v738
    %v766 = vmul.f32 %v764, %v735
    %s767 = sld [smem:[#allocation7 + $0x4b]]
    %v768 = vstv %s767
    %v769 = vmul.f32 %v768, %v183
    %v770 = vmul.f32 %v768, %v184
    %v771 = vadd.f32 %v765, %v769
    %v772 = vadd.f32 %v766, %v770
    %s773 = sld [smem:[#allocation7 + $0x8b]]
    %v774 = vstv %s773
    %v775 = vmul.f32 %v774, %v741
    %v776 = vmul.f32 %v774, %v744
    %v777 = vadd.f32 %v771, %v775
    %v778 = vadd.f32 %v772, %v776
    %v779 = vadd.f32 %v621, %v777
    %v780 = vadd.f32 %v622, %v778
    %s781 = sld [smem:[#allocation7 + $0x13]]
    %v782 = vstv %s781
    %v783 = vmul.f32 %v782, %v738
    %v784 = vmul.f32 %v782, %v735
    %s785 = sld [smem:[#allocation7 + $0x53]]
    %v786 = vstv %s785
    %v787 = vmul.f32 %v786, %v183
    %v788 = vmul.f32 %v786, %v184
    %v789 = vadd.f32 %v783, %v787
    %v790 = vadd.f32 %v784, %v788
    %s791 = sld [smem:[#allocation7 + $0x93]]
    %v792 = vstv %s791
    %v793 = vmul.f32 %v792, %v741
    %v794 = vmul.f32 %v792, %v744
    %v795 = vadd.f32 %v789, %v793
    %v796 = vadd.f32 %v790, %v794
    %v797 = vadd.f32 %v639, %v795
    %v798 = vadd.f32 %v640, %v796
    %s799 = sld [smem:[#allocation7 + $0x1b]]
    %v800 = vstv %s799
    %v801 = vmul.f32 %v800, %v738
    %v802 = vmul.f32 %v800, %v735
    %s803 = sld [smem:[#allocation7 + $0x5b]]
    %v804 = vstv %s803
    %v805 = vmul.f32 %v804, %v183
    %v806 = vmul.f32 %v804, %v184
    %v807 = vadd.f32 %v801, %v805
    %v808 = vadd.f32 %v802, %v806
    %s809 = sld [smem:[#allocation7 + $0x9b]]
    %v810 = vstv %s809
    %v811 = vmul.f32 %v810, %v741
    %v812 = vmul.f32 %v810, %v744
    %v813 = vadd.f32 %v807, %v811
    %v814 = vadd.f32 %v808, %v812
    %v815 = vadd.f32 %v657, %v813
    %v816 = vadd.f32 %v658, %v814
    %s817 = sld [smem:[#allocation7 + $0x23]]
    %v818 = vstv %s817
    %v819 = vmul.f32 %v818, %v738
    %v820 = vmul.f32 %v818, %v735
    %s821 = sld [smem:[#allocation7 + $0x63]]
    %v822 = vstv %s821
    %v823 = vmul.f32 %v822, %v183
    %v824 = vmul.f32 %v822, %v184
    %v825 = vadd.f32 %v819, %v823
    %v826 = vadd.f32 %v820, %v824
    %s827 = sld [smem:[#allocation7 + $0xa3]]
    %v828 = vstv %s827
    %v829 = vmul.f32 %v828, %v741
    %v830 = vmul.f32 %v828, %v744
    %v831 = vadd.f32 %v825, %v829
    %v832 = vadd.f32 %v826, %v830
    %v833 = vadd.f32 %v675, %v831
    %v834 = vadd.f32 %v676, %v832
    %s835 = sld [smem:[#allocation7 + $0x2b]]
    %v836 = vstv %s835
    %v837 = vmul.f32 %v836, %v738
    %v838 = vmul.f32 %v836, %v735
    %s839 = sld [smem:[#allocation7 + $0x6b]]
    %v840 = vstv %s839
    %v841 = vmul.f32 %v840, %v183
    %v842 = vmul.f32 %v840, %v184
    %v843 = vadd.f32 %v837, %v841
    %v844 = vadd.f32 %v838, %v842
    %s845 = sld [smem:[#allocation7 + $0xab]]
    %v846 = vstv %s845
    %v847 = vmul.f32 %v846, %v741
    %v848 = vmul.f32 %v846, %v744
    %v849 = vadd.f32 %v843, %v847
    %v850 = vadd.f32 %v844, %v848
    %v851 = vadd.f32 %v693, %v849
    %v852 = vadd.f32 %v694, %v850
    %s853 = sld [smem:[#allocation7 + $0x33]]
    %v854 = vstv %s853
    %v855 = vmul.f32 %v854, %v738
    %v856 = vmul.f32 %v854, %v735
    %s857 = sld [smem:[#allocation7 + $0x73]]
    %v858 = vstv %s857
    %v859 = vmul.f32 %v858, %v183
    %v860 = vmul.f32 %v858, %v184
    %v861 = vadd.f32 %v855, %v859
    %v862 = vadd.f32 %v856, %v860
    %s863 = sld [smem:[#allocation7 + $0xb3]]
    %v864 = vstv %s863
    %v865 = vmul.f32 %v864, %v741
    %v866 = vmul.f32 %v864, %v744
    %v867 = vadd.f32 %v861, %v865
    %v868 = vadd.f32 %v862, %v866
    %v869 = vadd.f32 %v711, %v867
    %v870 = vadd.f32 %v712, %v868
    %s871 = sld [smem:[#allocation7 + $0x3b]]
    %v872 = vstv %s871
    %v873 = vmul.f32 %v872, %v738
    %v874 = vmul.f32 %v872, %v735
    %s875 = sld [smem:[#allocation7 + $0x7b]]
    %v876 = vstv %s875
    %v877 = vmul.f32 %v876, %v183
    %v878 = vmul.f32 %v876, %v184
    %v879 = vadd.f32 %v873, %v877
    %v880 = vadd.f32 %v874, %v878
    %s881 = sld [smem:[#allocation7 + $0xbb]]
    %v882 = vstv %s881
    %v883 = vmul.f32 %v882, %v741
    %v884 = vmul.f32 %v882, %v744
    %v885 = vadd.f32 %v879, %v883
    %v886 = vadd.f32 %v880, %v884
    %v887 = vadd.f32 %v729, %v885
    %v888 = vadd.f32 %v730, %v886
    %v891 = vrot.slane %v205, 7
    %v892 = vrot.slane %v206, 7
    %v893 = vsel %vm82, %v891, %v892
    %v896 = vsel %vm82, 0.0, %v891
    %v897 = vrot.slane %v205, 1
    %v898 = vrot.slane %v206, 1
    %v899 = vsel %vm89, %v897, %v898
    %v902 = vsel %vm95, %v898, 0.0
    %s903 = sld [smem:[#allocation7 + $0x4]]
    %v904 = vstv %s903
    %v905 = vmul.f32 %v904, %v896
    %v906 = vmul.f32 %v904, %v893
    %s907 = sld [smem:[#allocation7 + $0x44]]
    %v908 = vstv %s907
    %v909 = vmul.f32 %v908, %v205
    %v910 = vmul.f32 %v908, %v206
    %v911 = vadd.f32 %v905, %v909
    %v912 = vadd.f32 %v906, %v910
    %s913 = sld [smem:[#allocation7 + $0x84]]
    %v914 = vstv %s913
    %v915 = vmul.f32 %v914, %v899
    %v916 = vmul.f32 %v914, %v902
    %v917 = vadd.f32 %v911, %v915
    %v918 = vadd.f32 %v912, %v916
    %v919 = vadd.f32 %v761, %v917
    %v920 = vadd.f32 %v762, %v918
    %s921 = sld [smem:[#allocation7 + $0xc]]
    %v922 = vstv %s921
    %v923 = vmul.f32 %v922, %v896
    %v924 = vmul.f32 %v922, %v893
    %s925 = sld [smem:[#allocation7 + $0x4c]]
    %v926 = vstv %s925
    %v927 = vmul.f32 %v926, %v205
    %v928 = vmul.f32 %v926, %v206
    %v929 = vadd.f32 %v923, %v927
    %v930 = vadd.f32 %v924, %v928
    %s931 = sld [smem:[#allocation7 + $0x8c]]
    %v932 = vstv %s931
    %v933 = vmul.f32 %v932, %v899
    %v934 = vmul.f32 %v932, %v902
    %v935 = vadd.f32 %v929, %v933
    %v936 = vadd.f32 %v930, %v934
    %v937 = vadd.f32 %v779, %v935
    %v938 = vadd.f32 %v780, %v936
    %s939 = sld [smem:[#allocation7 + $0x14]]
    %v940 = vstv %s939
    %v941 = vmul.f32 %v940, %v896
    %v942 = vmul.f32 %v940, %v893
    %s943 = sld [smem:[#allocation7 + $0x54]]
    %v944 = vstv %s943
    %v945 = vmul.f32 %v944, %v205
    %v946 = vmul.f32 %v944, %v206
    %v947 = vadd.f32 %v941, %v945
    %v948 = vadd.f32 %v942, %v946
    %s949 = sld [smem:[#allocation7 + $0x94]]
    %v950 = vstv %s949
    %v951 = vmul.f32 %v950, %v899
    %v952 = vmul.f32 %v950, %v902
    %v953 = vadd.f32 %v947, %v951
    %v954 = vadd.f32 %v948, %v952
    %v955 = vadd.f32 %v797, %v953
    %v956 = vadd.f32 %v798, %v954
    %s957 = sld [smem:[#allocation7 + $0x1c]]
    %v958 = vstv %s957
    %v959 = vmul.f32 %v958, %v896
    %v960 = vmul.f32 %v958, %v893
    %s961 = sld [smem:[#allocation7 + $0x5c]]
    %v962 = vstv %s961
    %v963 = vmul.f32 %v962, %v205
    %v964 = vmul.f32 %v962, %v206
    %v965 = vadd.f32 %v959, %v963
    %v966 = vadd.f32 %v960, %v964
    %s967 = sld [smem:[#allocation7 + $0x9c]]
    %v968 = vstv %s967
    %v969 = vmul.f32 %v968, %v899
    %v970 = vmul.f32 %v968, %v902
    %v971 = vadd.f32 %v965, %v969
    %v972 = vadd.f32 %v966, %v970
    %v973 = vadd.f32 %v815, %v971
    %v974 = vadd.f32 %v816, %v972
    %s975 = sld [smem:[#allocation7 + $0x24]]
    %v976 = vstv %s975
    %v977 = vmul.f32 %v976, %v896
    %v978 = vmul.f32 %v976, %v893
    %s979 = sld [smem:[#allocation7 + $0x64]]
    %v980 = vstv %s979
    %v981 = vmul.f32 %v980, %v205
    %v982 = vmul.f32 %v980, %v206
    %v983 = vadd.f32 %v977, %v981
    %v984 = vadd.f32 %v978, %v982
    %s985 = sld [smem:[#allocation7 + $0xa4]]
    %v986 = vstv %s985
    %v987 = vmul.f32 %v986, %v899
    %v988 = vmul.f32 %v986, %v902
    %v989 = vadd.f32 %v983, %v987
    %v990 = vadd.f32 %v984, %v988
    %v991 = vadd.f32 %v833, %v989
    %v992 = vadd.f32 %v834, %v990
    %s993 = sld [smem:[#allocation7 + $0x2c]]
    %v994 = vstv %s993
    %v995 = vmul.f32 %v994, %v896
    %v996 = vmul.f32 %v994, %v893
    %s997 = sld [smem:[#allocation7 + $0x6c]]
    %v998 = vstv %s997
    %v999 = vmul.f32 %v998, %v205
    %v1000 = vmul.f32 %v998, %v206
    %v1001 = vadd.f32 %v995, %v999
    %v1002 = vadd.f32 %v996, %v1000
    %s1003 = sld [smem:[#allocation7 + $0xac]]
    %v1004 = vstv %s1003
    %v1005 = vmul.f32 %v1004, %v899
    %v1006 = vmul.f32 %v1004, %v902
    %v1007 = vadd.f32 %v1001, %v1005
    %v1008 = vadd.f32 %v1002, %v1006
    %v1009 = vadd.f32 %v851, %v1007
    %v1010 = vadd.f32 %v852, %v1008
    %s1011 = sld [smem:[#allocation7 + $0x34]]
    %v1012 = vstv %s1011
    %v1013 = vmul.f32 %v1012, %v896
    %v1014 = vmul.f32 %v1012, %v893
    %s1015 = sld [smem:[#allocation7 + $0x74]]
    %v1016 = vstv %s1015
    %v1017 = vmul.f32 %v1016, %v205
    %v1018 = vmul.f32 %v1016, %v206
    %v1019 = vadd.f32 %v1013, %v1017
    %v1020 = vadd.f32 %v1014, %v1018
    %s1021 = sld [smem:[#allocation7 + $0xb4]]
    %v1022 = vstv %s1021
    %v1023 = vmul.f32 %v1022, %v899
    %v1024 = vmul.f32 %v1022, %v902
    %v1025 = vadd.f32 %v1019, %v1023
    %v1026 = vadd.f32 %v1020, %v1024
    %v1027 = vadd.f32 %v869, %v1025
    %v1028 = vadd.f32 %v870, %v1026
    %s1029 = sld [smem:[#allocation7 + $0x3c]]
    %v1030 = vstv %s1029
    %v1031 = vmul.f32 %v1030, %v896
    %v1032 = vmul.f32 %v1030, %v893
    %s1033 = sld [smem:[#allocation7 + $0x7c]]
    %v1034 = vstv %s1033
    %v1035 = vmul.f32 %v1034, %v205
    %v1036 = vmul.f32 %v1034, %v206
    %v1037 = vadd.f32 %v1031, %v1035
    %v1038 = vadd.f32 %v1032, %v1036
    %s1039 = sld [smem:[#allocation7 + $0xbc]]
    %v1040 = vstv %s1039
    %v1041 = vmul.f32 %v1040, %v899
    %v1042 = vmul.f32 %v1040, %v902
    %v1043 = vadd.f32 %v1037, %v1041
    %v1044 = vadd.f32 %v1038, %v1042
    %v1045 = vadd.f32 %v887, %v1043
    %v1046 = vadd.f32 %v888, %v1044
    %v1049 = vrot.slane %v227, 7
    %v1050 = vrot.slane %v228, 7
    %v1051 = vsel %vm82, %v1049, %v1050
    %v1054 = vsel %vm82, 0.0, %v1049
    %v1055 = vrot.slane %v227, 1
    %v1056 = vrot.slane %v228, 1
    %v1057 = vsel %vm89, %v1055, %v1056
    %v1060 = vsel %vm95, %v1056, 0.0
    %s1061 = sld [smem:[#allocation7 + $0x5]]
    %v1062 = vstv %s1061
    %v1063 = vmul.f32 %v1062, %v1054
    %v1064 = vmul.f32 %v1062, %v1051
    %s1065 = sld [smem:[#allocation7 + $0x45]]
    %v1066 = vstv %s1065
    %v1067 = vmul.f32 %v1066, %v227
    %v1068 = vmul.f32 %v1066, %v228
    %v1069 = vadd.f32 %v1063, %v1067
    %v1070 = vadd.f32 %v1064, %v1068
    %s1071 = sld [smem:[#allocation7 + $0x85]]
    %v1072 = vstv %s1071
    %v1073 = vmul.f32 %v1072, %v1057
    %v1074 = vmul.f32 %v1072, %v1060
    %v1075 = vadd.f32 %v1069, %v1073
    %v1076 = vadd.f32 %v1070, %v1074
    %v1077 = vadd.f32 %v919, %v1075
    %v1078 = vadd.f32 %v920, %v1076
    %s1079 = sld [smem:[#allocation7 + $0xd]]
    %v1080 = vstv %s1079
    %v1081 = vmul.f32 %v1080, %v1054
    %v1082 = vmul.f32 %v1080, %v1051
    %s1083 = sld [smem:[#allocation7 + $0x4d]]
    %v1084 = vstv %s1083
    %v1085 = vmul.f32 %v1084, %v227
    %v1086 = vmul.f32 %v1084, %v228
    %v1087 = vadd.f32 %v1081, %v1085
    %v1088 = vadd.f32 %v1082, %v1086
    %s1089 = sld [smem:[#allocation7 + $0x8d]]
    %v1090 = vstv %s1089
    %v1091 = vmul.f32 %v1090, %v1057
    %v1092 = vmul.f32 %v1090, %v1060
    %v1093 = vadd.f32 %v1087, %v1091
    %v1094 = vadd.f32 %v1088, %v1092
    %v1095 = vadd.f32 %v937, %v1093
    %v1096 = vadd.f32 %v938, %v1094
    %s1097 = sld [smem:[#allocation7 + $0x15]]
    %v1098 = vstv %s1097
    %v1099 = vmul.f32 %v1098, %v1054
    %v1100 = vmul.f32 %v1098, %v1051
    %s1101 = sld [smem:[#allocation7 + $0x55]]
    %v1102 = vstv %s1101
    %v1103 = vmul.f32 %v1102, %v227
    %v1104 = vmul.f32 %v1102, %v228
    %v1105 = vadd.f32 %v1099, %v1103
    %v1106 = vadd.f32 %v1100, %v1104
    %s1107 = sld [smem:[#allocation7 + $0x95]]
    %v1108 = vstv %s1107
    %v1109 = vmul.f32 %v1108, %v1057
    %v1110 = vmul.f32 %v1108, %v1060
    %v1111 = vadd.f32 %v1105, %v1109
    %v1112 = vadd.f32 %v1106, %v1110
    %v1113 = vadd.f32 %v955, %v1111
    %v1114 = vadd.f32 %v956, %v1112
    %s1115 = sld [smem:[#allocation7 + $0x1d]]
    %v1116 = vstv %s1115
    %v1117 = vmul.f32 %v1116, %v1054
    %v1118 = vmul.f32 %v1116, %v1051
    %s1119 = sld [smem:[#allocation7 + $0x5d]]
    %v1120 = vstv %s1119
    %v1121 = vmul.f32 %v1120, %v227
    %v1122 = vmul.f32 %v1120, %v228
    %v1123 = vadd.f32 %v1117, %v1121
    %v1124 = vadd.f32 %v1118, %v1122
    %s1125 = sld [smem:[#allocation7 + $0x9d]]
    %v1126 = vstv %s1125
    %v1127 = vmul.f32 %v1126, %v1057
    %v1128 = vmul.f32 %v1126, %v1060
    %v1129 = vadd.f32 %v1123, %v1127
    %v1130 = vadd.f32 %v1124, %v1128
    %v1131 = vadd.f32 %v973, %v1129
    %v1132 = vadd.f32 %v974, %v1130
    %s1133 = sld [smem:[#allocation7 + $0x25]]
    %v1134 = vstv %s1133
    %v1135 = vmul.f32 %v1134, %v1054
    %v1136 = vmul.f32 %v1134, %v1051
    %s1137 = sld [smem:[#allocation7 + $0x65]]
    %v1138 = vstv %s1137
    %v1139 = vmul.f32 %v1138, %v227
    %v1140 = vmul.f32 %v1138, %v228
    %v1141 = vadd.f32 %v1135, %v1139
    %v1142 = vadd.f32 %v1136, %v1140
    %s1143 = sld [smem:[#allocation7 + $0xa5]]
    %v1144 = vstv %s1143
    %v1145 = vmul.f32 %v1144, %v1057
    %v1146 = vmul.f32 %v1144, %v1060
    %v1147 = vadd.f32 %v1141, %v1145
    %v1148 = vadd.f32 %v1142, %v1146
    %v1149 = vadd.f32 %v991, %v1147
    %v1150 = vadd.f32 %v992, %v1148
    %s1151 = sld [smem:[#allocation7 + $0x2d]]
    %v1152 = vstv %s1151
    %v1153 = vmul.f32 %v1152, %v1054
    %v1154 = vmul.f32 %v1152, %v1051
    %s1155 = sld [smem:[#allocation7 + $0x6d]]
    %v1156 = vstv %s1155
    %v1157 = vmul.f32 %v1156, %v227
    %v1158 = vmul.f32 %v1156, %v228
    %v1159 = vadd.f32 %v1153, %v1157
    %v1160 = vadd.f32 %v1154, %v1158
    %s1161 = sld [smem:[#allocation7 + $0xad]]
    %v1162 = vstv %s1161
    %v1163 = vmul.f32 %v1162, %v1057
    %v1164 = vmul.f32 %v1162, %v1060
    %v1165 = vadd.f32 %v1159, %v1163
    %v1166 = vadd.f32 %v1160, %v1164
    %v1167 = vadd.f32 %v1009, %v1165
    %v1168 = vadd.f32 %v1010, %v1166
    %s1169 = sld [smem:[#allocation7 + $0x35]]
    %v1170 = vstv %s1169
    %v1171 = vmul.f32 %v1170, %v1054
    %v1172 = vmul.f32 %v1170, %v1051
    %s1173 = sld [smem:[#allocation7 + $0x75]]
    %v1174 = vstv %s1173
    %v1175 = vmul.f32 %v1174, %v227
    %v1176 = vmul.f32 %v1174, %v228
    %v1177 = vadd.f32 %v1171, %v1175
    %v1178 = vadd.f32 %v1172, %v1176
    %s1179 = sld [smem:[#allocation7 + $0xb5]]
    %v1180 = vstv %s1179
    %v1181 = vmul.f32 %v1180, %v1057
    %v1182 = vmul.f32 %v1180, %v1060
    %v1183 = vadd.f32 %v1177, %v1181
    %v1184 = vadd.f32 %v1178, %v1182
    %v1185 = vadd.f32 %v1027, %v1183
    %v1186 = vadd.f32 %v1028, %v1184
    %s1187 = sld [smem:[#allocation7 + $0x3d]]
    %v1188 = vstv %s1187
    %v1189 = vmul.f32 %v1188, %v1054
    %v1190 = vmul.f32 %v1188, %v1051
    %s1191 = sld [smem:[#allocation7 + $0x7d]]
    %v1192 = vstv %s1191
    %v1193 = vmul.f32 %v1192, %v227
    %v1194 = vmul.f32 %v1192, %v228
    %v1195 = vadd.f32 %v1189, %v1193
    %v1196 = vadd.f32 %v1190, %v1194
    %s1197 = sld [smem:[#allocation7 + $0xbd]]
    %v1198 = vstv %s1197
    %v1199 = vmul.f32 %v1198, %v1057
    %v1200 = vmul.f32 %v1198, %v1060
    %v1201 = vadd.f32 %v1195, %v1199
    %v1202 = vadd.f32 %v1196, %v1200
    %v1203 = vadd.f32 %v1045, %v1201
    %v1204 = vadd.f32 %v1046, %v1202
    %v1207 = vrot.slane %v249, 7
    %v1208 = vrot.slane %v250, 7
    %v1209 = vsel %vm82, %v1207, %v1208
    %v1212 = vsel %vm82, 0.0, %v1207
    %v1213 = vrot.slane %v249, 1
    %v1214 = vrot.slane %v250, 1
    %v1215 = vsel %vm89, %v1213, %v1214
    %v1218 = vsel %vm95, %v1214, 0.0
    %s1219 = sld [smem:[#allocation7 + $0x6]]
    %v1220 = vstv %s1219
    %v1221 = vmul.f32 %v1220, %v1212
    %v1222 = vmul.f32 %v1220, %v1209
    %s1223 = sld [smem:[#allocation7 + $0x46]]
    %v1224 = vstv %s1223
    %v1225 = vmul.f32 %v1224, %v249
    %v1226 = vmul.f32 %v1224, %v250
    %v1227 = vadd.f32 %v1221, %v1225
    %v1228 = vadd.f32 %v1222, %v1226
    %s1229 = sld [smem:[#allocation7 + $0x86]]
    %v1230 = vstv %s1229
    %v1231 = vmul.f32 %v1230, %v1215
    %v1232 = vmul.f32 %v1230, %v1218
    %v1233 = vadd.f32 %v1227, %v1231
    %v1234 = vadd.f32 %v1228, %v1232
    %v1235 = vadd.f32 %v1077, %v1233
    %v1236 = vadd.f32 %v1078, %v1234
    %s1237 = sld [smem:[#allocation7 + $0xe]]
    %v1238 = vstv %s1237
    %v1239 = vmul.f32 %v1238, %v1212
    %v1240 = vmul.f32 %v1238, %v1209
    %s1241 = sld [smem:[#allocation7 + $0x4e]]
    %v1242 = vstv %s1241
    %v1243 = vmul.f32 %v1242, %v249
    %v1244 = vmul.f32 %v1242, %v250
    %v1245 = vadd.f32 %v1239, %v1243
    %v1246 = vadd.f32 %v1240, %v1244
    %s1247 = sld [smem:[#allocation7 + $0x8e]]
    %v1248 = vstv %s1247
    %v1249 = vmul.f32 %v1248, %v1215
    %v1250 = vmul.f32 %v1248, %v1218
    %v1251 = vadd.f32 %v1245, %v1249
    %v1252 = vadd.f32 %v1246, %v1250
    %v1253 = vadd.f32 %v1095, %v1251
    %v1254 = vadd.f32 %v1096, %v1252
    %s1255 = sld [smem:[#allocation7 + $0x16]]
    %v1256 = vstv %s1255
    %v1257 = vmul.f32 %v1256, %v1212
    %v1258 = vmul.f32 %v1256, %v1209
    %s1259 = sld [smem:[#allocation7 + $0x56]]
    %v1260 = vstv %s1259
    %v1261 = vmul.f32 %v1260, %v249
    %v1262 = vmul.f32 %v1260, %v250
    %v1263 = vadd.f32 %v1257, %v1261
    %v1264 = vadd.f32 %v1258, %v1262
    %s1265 = sld [smem:[#allocation7 + $0x96]]
    %v1266 = vstv %s1265
    %v1267 = vmul.f32 %v1266, %v1215
    %v1268 = vmul.f32 %v1266, %v1218
    %v1269 = vadd.f32 %v1263, %v1267
    %v1270 = vadd.f32 %v1264, %v1268
    %v1271 = vadd.f32 %v1113, %v1269
    %v1272 = vadd.f32 %v1114, %v1270
    %s1273 = sld [smem:[#allocation7 + $0x1e]]
    %v1274 = vstv %s1273
    %v1275 = vmul.f32 %v1274, %v1212
    %v1276 = vmul.f32 %v1274, %v1209
    %s1277 = sld [smem:[#allocation7 + $0x5e]]
    %v1278 = vstv %s1277
    %v1279 = vmul.f32 %v1278, %v249
    %v1280 = vmul.f32 %v1278, %v250
    %v1281 = vadd.f32 %v1275, %v1279
    %v1282 = vadd.f32 %v1276, %v1280
    %s1283 = sld [smem:[#allocation7 + $0x9e]]
    %v1284 = vstv %s1283
    %v1285 = vmul.f32 %v1284, %v1215
    %v1286 = vmul.f32 %v1284, %v1218
    %v1287 = vadd.f32 %v1281, %v1285
    %v1288 = vadd.f32 %v1282, %v1286
    %v1289 = vadd.f32 %v1131, %v1287
    %v1290 = vadd.f32 %v1132, %v1288
    %s1291 = sld [smem:[#allocation7 + $0x26]]
    %v1292 = vstv %s1291
    %v1293 = vmul.f32 %v1292, %v1212
    %v1294 = vmul.f32 %v1292, %v1209
    %s1295 = sld [smem:[#allocation7 + $0x66]]
    %v1296 = vstv %s1295
    %v1297 = vmul.f32 %v1296, %v249
    %v1298 = vmul.f32 %v1296, %v250
    %v1299 = vadd.f32 %v1293, %v1297
    %v1300 = vadd.f32 %v1294, %v1298
    %s1301 = sld [smem:[#allocation7 + $0xa6]]
    %v1302 = vstv %s1301
    %v1303 = vmul.f32 %v1302, %v1215
    %v1304 = vmul.f32 %v1302, %v1218
    %v1305 = vadd.f32 %v1299, %v1303
    %v1306 = vadd.f32 %v1300, %v1304
    %v1307 = vadd.f32 %v1149, %v1305
    %v1308 = vadd.f32 %v1150, %v1306
    %s1309 = sld [smem:[#allocation7 + $0x2e]]
    %v1310 = vstv %s1309
    %v1311 = vmul.f32 %v1310, %v1212
    %v1312 = vmul.f32 %v1310, %v1209
    %s1313 = sld [smem:[#allocation7 + $0x6e]]
    %v1314 = vstv %s1313
    %v1315 = vmul.f32 %v1314, %v249
    %v1316 = vmul.f32 %v1314, %v250
    %v1317 = vadd.f32 %v1311, %v1315
    %v1318 = vadd.f32 %v1312, %v1316
    %s1319 = sld [smem:[#allocation7 + $0xae]]
    %v1320 = vstv %s1319
    %v1321 = vmul.f32 %v1320, %v1215
    %v1322 = vmul.f32 %v1320, %v1218
    %v1323 = vadd.f32 %v1317, %v1321
    %v1324 = vadd.f32 %v1318, %v1322
    %v1325 = vadd.f32 %v1167, %v1323
    %v1326 = vadd.f32 %v1168, %v1324
    %s1327 = sld [smem:[#allocation7 + $0x36]]
    %v1328 = vstv %s1327
    %v1329 = vmul.f32 %v1328, %v1212
    %v1330 = vmul.f32 %v1328, %v1209
    %s1331 = sld [smem:[#allocation7 + $0x76]]
    %v1332 = vstv %s1331
    %v1333 = vmul.f32 %v1332, %v249
    %v1334 = vmul.f32 %v1332, %v250
    %v1335 = vadd.f32 %v1329, %v1333
    %v1336 = vadd.f32 %v1330, %v1334
    %s1337 = sld [smem:[#allocation7 + $0xb6]]
    %v1338 = vstv %s1337
    %v1339 = vmul.f32 %v1338, %v1215
    %v1340 = vmul.f32 %v1338, %v1218
    %v1341 = vadd.f32 %v1335, %v1339
    %v1342 = vadd.f32 %v1336, %v1340
    %v1343 = vadd.f32 %v1185, %v1341
    %v1344 = vadd.f32 %v1186, %v1342
    %s1345 = sld [smem:[#allocation7 + $0x3e]]
    %v1346 = vstv %s1345
    %v1347 = vmul.f32 %v1346, %v1212
    %v1348 = vmul.f32 %v1346, %v1209
    %s1349 = sld [smem:[#allocation7 + $0x7e]]
    %v1350 = vstv %s1349
    %v1351 = vmul.f32 %v1350, %v249
    %v1352 = vmul.f32 %v1350, %v250
    %v1353 = vadd.f32 %v1347, %v1351
    %v1354 = vadd.f32 %v1348, %v1352
    %s1355 = sld [smem:[#allocation7 + $0xbe]]
    %v1356 = vstv %s1355
    %v1357 = vmul.f32 %v1356, %v1215
    %v1358 = vmul.f32 %v1356, %v1218
    %v1359 = vadd.f32 %v1353, %v1357
    %v1360 = vadd.f32 %v1354, %v1358
    %v1361 = vadd.f32 %v1203, %v1359
    %v1362 = vadd.f32 %v1204, %v1360
    %v1365 = vrot.slane %v271, 7
    %v1366 = vrot.slane %v272, 7
    %v1367 = vsel %vm82, %v1365, %v1366
    %v1370 = vsel %vm82, 0.0, %v1365
    %v1371 = vrot.slane %v271, 1
    %v1372 = vrot.slane %v272, 1
    %v1373 = vsel %vm89, %v1371, %v1372
    %v1376 = vsel %vm95, %v1372, 0.0
    %s1377 = sld [smem:[#allocation7 + $0x7]]
    %v1378 = vstv %s1377
    %v1379 = vmul.f32 %v1378, %v1370
    %v1380 = vmul.f32 %v1378, %v1367
    %s1381 = sld [smem:[#allocation7 + $0x47]]
    %v1382 = vstv %s1381
    %v1383 = vmul.f32 %v1382, %v271
    %v1384 = vmul.f32 %v1382, %v272
    %v1385 = vadd.f32 %v1379, %v1383
    %v1386 = vadd.f32 %v1380, %v1384
    %s1387 = sld [smem:[#allocation7 + $0x87]]
    %v1388 = vstv %s1387
    %v1389 = vmul.f32 %v1388, %v1373
    %v1390 = vmul.f32 %v1388, %v1376
    %v1391 = vadd.f32 %v1385, %v1389
    %v1392 = vadd.f32 %v1386, %v1390
    %v1393 = vadd.f32 %v1235, %v1391
    %v1394 = vadd.f32 %v1236, %v1392
    %s1395 = sld [smem:[#allocation7 + $0xf]]
    %v1396 = vstv %s1395
    %v1397 = vmul.f32 %v1396, %v1370
    %v1398 = vmul.f32 %v1396, %v1367
    %s1399 = sld [smem:[#allocation7 + $0x4f]]
    %v1400 = vstv %s1399
    %v1401 = vmul.f32 %v1400, %v271
    %v1402 = vmul.f32 %v1400, %v272
    %v1403 = vadd.f32 %v1397, %v1401
    %v1404 = vadd.f32 %v1398, %v1402
    %s1405 = sld [smem:[#allocation7 + $0x8f]]
    %v1406 = vstv %s1405
    %v1407 = vmul.f32 %v1406, %v1373
    %v1408 = vmul.f32 %v1406, %v1376
    %v1409 = vadd.f32 %v1403, %v1407
    %v1410 = vadd.f32 %v1404, %v1408
    %v1411 = vadd.f32 %v1253, %v1409
    %v1412 = vadd.f32 %v1254, %v1410
    %s1413 = sld [smem:[#allocation7 + $0x17]]
    %v1414 = vstv %s1413
    %v1415 = vmul.f32 %v1414, %v1370
    %v1416 = vmul.f32 %v1414, %v1367
    %s1417 = sld [smem:[#allocation7 + $0x57]]
    %v1418 = vstv %s1417
    %v1419 = vmul.f32 %v1418, %v271
    %v1420 = vmul.f32 %v1418, %v272
    %v1421 = vadd.f32 %v1415, %v1419
    %v1422 = vadd.f32 %v1416, %v1420
    %s1423 = sld [smem:[#allocation7 + $0x97]]
    %v1424 = vstv %s1423
    %v1425 = vmul.f32 %v1424, %v1373
    %v1426 = vmul.f32 %v1424, %v1376
    %v1427 = vadd.f32 %v1421, %v1425
    %v1428 = vadd.f32 %v1422, %v1426
    %v1429 = vadd.f32 %v1271, %v1427
    %v1430 = vadd.f32 %v1272, %v1428
    %s1431 = sld [smem:[#allocation7 + $0x1f]]
    %v1432 = vstv %s1431
    %v1433 = vmul.f32 %v1432, %v1370
    %v1434 = vmul.f32 %v1432, %v1367
    %s1435 = sld [smem:[#allocation7 + $0x5f]]
    %v1436 = vstv %s1435
    %v1437 = vmul.f32 %v1436, %v271
    %v1438 = vmul.f32 %v1436, %v272
    %v1439 = vadd.f32 %v1433, %v1437
    %v1440 = vadd.f32 %v1434, %v1438
    %s1441 = sld [smem:[#allocation7 + $0x9f]]
    %v1442 = vstv %s1441
    %v1443 = vmul.f32 %v1442, %v1373
    %v1444 = vmul.f32 %v1442, %v1376
    %v1445 = vadd.f32 %v1439, %v1443
    %v1446 = vadd.f32 %v1440, %v1444
    %v1447 = vadd.f32 %v1289, %v1445
    %v1448 = vadd.f32 %v1290, %v1446
    %s1449 = sld [smem:[#allocation7 + $0x27]]
    %v1450 = vstv %s1449
    %v1451 = vmul.f32 %v1450, %v1370
    %v1452 = vmul.f32 %v1450, %v1367
    %s1453 = sld [smem:[#allocation7 + $0x67]]
    %v1454 = vstv %s1453
    %v1455 = vmul.f32 %v1454, %v271
    %v1456 = vmul.f32 %v1454, %v272
    %v1457 = vadd.f32 %v1451, %v1455
    %v1458 = vadd.f32 %v1452, %v1456
    %s1459 = sld [smem:[#allocation7 + $0xa7]]
    %v1460 = vstv %s1459
    %v1461 = vmul.f32 %v1460, %v1373
    %v1462 = vmul.f32 %v1460, %v1376
    %v1463 = vadd.f32 %v1457, %v1461
    %v1464 = vadd.f32 %v1458, %v1462
    %v1465 = vadd.f32 %v1307, %v1463
    %v1466 = vadd.f32 %v1308, %v1464
    %s1467 = sld [smem:[#allocation7 + $0x2f]]
    %v1468 = vstv %s1467
    %v1469 = vmul.f32 %v1468, %v1370
    %v1470 = vmul.f32 %v1468, %v1367
    %s1471 = sld [smem:[#allocation7 + $0x6f]]
    %v1472 = vstv %s1471
    %v1473 = vmul.f32 %v1472, %v271
    %v1474 = vmul.f32 %v1472, %v272
    %v1475 = vadd.f32 %v1469, %v1473
    %v1476 = vadd.f32 %v1470, %v1474
    %s1477 = sld [smem:[#allocation7 + $0xaf]]
    %v1478 = vstv %s1477
    %v1479 = vmul.f32 %v1478, %v1373
    %v1480 = vmul.f32 %v1478, %v1376
    %v1481 = vadd.f32 %v1475, %v1479
    %v1482 = vadd.f32 %v1476, %v1480
    %v1483 = vadd.f32 %v1325, %v1481
    %v1484 = vadd.f32 %v1326, %v1482
    %s1485 = sld [smem:[#allocation7 + $0x37]]
    %v1486 = vstv %s1485
    %v1487 = vmul.f32 %v1486, %v1370
    %v1488 = vmul.f32 %v1486, %v1367
    %s1489 = sld [smem:[#allocation7 + $0x77]]
    %v1490 = vstv %s1489
    %v1491 = vmul.f32 %v1490, %v271
    %v1492 = vmul.f32 %v1490, %v272
    %v1493 = vadd.f32 %v1487, %v1491
    %v1494 = vadd.f32 %v1488, %v1492
    %s1495 = sld [smem:[#allocation7 + $0xb7]]
    %v1496 = vstv %s1495
    %v1497 = vmul.f32 %v1496, %v1373
    %v1498 = vmul.f32 %v1496, %v1376
    %v1499 = vadd.f32 %v1493, %v1497
    %v1500 = vadd.f32 %v1494, %v1498
    %v1501 = vadd.f32 %v1343, %v1499
    %v1502 = vadd.f32 %v1344, %v1500
    %s1503 = sld [smem:[#allocation7 + $0x3f]]
    %v1504 = vstv %s1503
    %v1505 = vmul.f32 %v1504, %v1370
    %v1506 = vmul.f32 %v1504, %v1367
    %s1507 = sld [smem:[#allocation7 + $0x7f]]
    %v1508 = vstv %s1507
    %v1509 = vmul.f32 %v1508, %v271
    %v1510 = vmul.f32 %v1508, %v272
    %v1511 = vadd.f32 %v1505, %v1509
    %v1512 = vadd.f32 %v1506, %v1510
    %s1513 = sld [smem:[#allocation7 + $0xbf]]
    %v1514 = vstv %s1513
    %v1515 = vmul.f32 %v1514, %v1373
    %v1516 = vmul.f32 %v1514, %v1376
    %v1517 = vadd.f32 %v1511, %v1515
    %v1518 = vadd.f32 %v1512, %v1516
    %v1519 = vadd.f32 %v1361, %v1517
    %v1520 = vadd.f32 %v1362, %v1518
    %s1521 = sld [smem:[#allocation8]]
    %v1522 = vstv %s1521
    %v1523 = vadd.f32 %v1393, %v1522
    %v1524 = vadd.f32 %v1394, %v1522
    %v1525 = vmax.f32 %v1523, 0.0
    %v1526 = vmax.f32 %v1524, 0.0
    %s1527 = sld [smem:[#allocation8 + $0x1]]
    %v1528 = vstv %s1527
    %v1529 = vadd.f32 %v1411, %v1528
    %v1530 = vadd.f32 %v1412, %v1528
    %v1531 = vmax.f32 %v1529, 0.0
    %v1532 = vmax.f32 %v1530, 0.0
    %s1533 = sld [smem:[#allocation8 + $0x2]]
    %v1534 = vstv %s1533
    %v1535 = vadd.f32 %v1429, %v1534
    %v1536 = vadd.f32 %v1430, %v1534
    %v1537 = vmax.f32 %v1535, 0.0
    %v1538 = vmax.f32 %v1536, 0.0
    %s1539 = sld [smem:[#allocation8 + $0x3]]
    %v1540 = vstv %s1539
    %v1541 = vadd.f32 %v1447, %v1540
    %v1542 = vadd.f32 %v1448, %v1540
    %v1543 = vmax.f32 %v1541, 0.0
    %v1544 = vmax.f32 %v1542, 0.0
    %s1545 = sld [smem:[#allocation8 + $0x4]]
    %v1546 = vstv %s1545
    %v1547 = vadd.f32 %v1465, %v1546
    %v1548 = vadd.f32 %v1466, %v1546
    %v1549 = vmax.f32 %v1547, 0.0
    %v1550 = vmax.f32 %v1548, 0.0
    %s1551 = sld [smem:[#allocation8 + $0x5]]
    %v1552 = vstv %s1551
    %v1553 = vadd.f32 %v1483, %v1552
    %v1554 = vadd.f32 %v1484, %v1552
    %v1555 = vmax.f32 %v1553, 0.0
    %v1556 = vmax.f32 %v1554, 0.0
    %s1557 = sld [smem:[#allocation8 + $0x6]]
    %v1558 = vstv %s1557
    %v1559 = vadd.f32 %v1501, %v1558
    %v1560 = vadd.f32 %v1502, %v1558
    %v1561 = vmax.f32 %v1559, 0.0
    %v1562 = vmax.f32 %v1560, 0.0
    %s1563 = sld [smem:[#allocation8 + $0x7]]
    %v1564 = vstv %s1563
    %v1565 = vadd.f32 %v1519, %v1564
    %v1566 = vadd.f32 %v1520, %v1564
    %v1567 = vmax.f32 %v1565, 0.0
    %v1568 = vmax.f32 %v1566, 0.0
    %v1571 = vrot.slane %v1531, 1
    %v1572 = vrot.slane %v1532, 1
    %v1573 = vsel %vm89, %v1571, %v1572
    %v1579 = vrot.slane %v1537, 2
    %v1580 = vrot.slane %v1538, 2
    %v1581 = vsel %vm95, %v1579, %v1580
    %vm1587 = vcmask 1044480
    %v1588 = vrot.slane %v1543, 3
    %v1589 = vrot.slane %v1544, 3
    %v1590 = vsel %vm1587, %v1588, %v1589
    %vm1596 = vcmask 1043456
    %v1597 = vrot.slane %v1549, 4
    %v1598 = vrot.slane %v1550, 4
    %v1599 = vsel %vm1596, %v1597, %v1598
    %vm1605 = vcmask 1042432
    %v1606 = vrot.slane %v1555, 5
    %v1607 = vrot.slane %v1556, 5
    %v1608 = vsel %vm1605, %v1606, %v1607
    %vm1614 = vcmask 1041408
    %v1615 = vrot.slane %v1561, 6
    %v1616 = vrot.slane %v1562, 6
    %v1617 = vsel %vm1614, %v1615, %v1616
    %v1623 = vrot.slane %v1567, 7
    %v1624 = vrot.slane %v1568, 7
    %v1625 = vsel %vm82, %v1623, %v1624
    %v1628 = vsel %vm89, %v1526, %v1571
    %v1629 = vsel %vm95, %v1572, %v1579
    %v1630 = vsel %vm1587, %v1580, %v1588
    %v1631 = vsel %vm1596, %v1589, %v1597
    %v1632 = vsel %vm1605, %v1598, %v1606
    %v1633 = vsel %vm1614, %v1607, %v1615
    %v1634 = vsel %vm82, %v1616, %v1623
    %v1635 = vpack.c.bf16 %v1628, %v1525
    %v1636 = vpack.c.bf16 %v1629, %v1573
    %v1637 = vpack.c.bf16 %v1630, %v1581
    %v1638 = vpack.c.bf16 %v1631, %v1590
    %v1639 = vpack.c.bf16 %v1632, %v1599
    %v1640 = vpack.c.bf16 %v1633, %v1608
    %v1641 = vpack.c.bf16 %v1634, %v1617
    %v1642 = vpack.c.bf16 %v1625, %v1625
    %v1643 = vld [vmem:[%s5] sm:$0xf]
    %v1644 = vld [vmem:[%s5 + $0x4] sm:$0xf]
    %v1645 = vld [vmem:[%s5 + $0x8] sm:$0xf]
    %v1646 = vld [vmem:[%s6] sm:$0xff]
    %v1647 = vld [vmem:[%s6 + $0x8] sm:$0xff]
    %v1648 = vld [vmem:[%s6 + $0x10] sm:$0xff]
    %1650 = vset.pattern.permute.xlu0 0
    %1651 = vperm.xlu0 %1650, %v1646
    %v1652 = vpop.permute.xlu0 %1651
    %1655 = vset.pattern.permute.xlu0 0
    %1656 = vperm.xlu0 %1655, %v1647
    %v1657 = vpop.permute.xlu0 %1656
    %1660 = vset.pattern.permute.xlu0 0
    %1661 = vperm.xlu0 %1660, %v1648
    %v1662 = vpop.permute.xlu0 %1661
    %v1667 = vunpack.c.l.b16 %v1643
    %v1668 = vunpack.c.l.b16 %v1644
    %v1669 = vunpack.c.l.b16 %v1645
    %v1670 = vpack.c.b16 %v1668, %v1667
    %v1671 = vpack.c.b16 %v1669, %v1669
    %vm1672 = vcmask 982016
    %v1674 = vsel %vm1672, %v1670, 0
    %v1677 = vsel %vm1672, %v1671, 0
    %v1680 = vsel %vm1596, %v1642, 0
    %1682 = vmatpush.bf16.msra.mxu0 %v1680
    %1683 = vmatpush.bf16.msra.mxu0 %v1641
    %1684 = vmatpush.bf16.msra.mxu0 %v1640
    %1685 = vmatpush.bf16.msra.mxu0 %v1639
    %1686 = vmatpush.bf16.msra.mxu0 %v1638
    %1687 = vmatpush.bf16.msra.mxu0 %v1637
    %1688 = vmatpush.bf16.msra.mxu0 %v1636
    %1689 = vmatpush.bf16.msra.mxu0 %v1635
    %1690 = vmatmul.bf16.gmra.mxu0 %v1674
    %v1691 = vpop.f32.mrf.mxu0
    %v1692 = vadd.f32 %v1652, %v1691
    %v1693 = vpop.f32.mrf.mxu0
    %v1694 = vadd.f32 %v1657, %v1693
    %1695 = vmatmul.bf16.gmra.mxu0 %v1677
    %v1696 = vpop.f32.mrf.mxu0
    %v1697 = vadd.f32 %v1662, %v1696
    %v1698 = vpop.f32.mrf.mxu0
    %1699 = vdwg.mxu0
    %v1700 = vadd.f32 %v1692, %v77
    %v1701 = vadd.f32 %v1694, %v77
    %v1702 = vadd.f32 %v1697, %v77
    %1703 = vst [vmem:[#allocation10] sm:$0xff] %v1700
    %1704 = vst [vmem:[#allocation10 + $0x8] sm:$0xff] %v1701
    %1705 = vst [vmem:[#allocation10 + $0x10] sm:$0xff] %v1702
    // Predicated region
    $region46: #{tpu_custom_call.1} parent=1 // pred_check
      _
    $region47: #{tpu_custom_call.1} parent=1 // pred_check_branch
      %1707 = sbr.rel (0) target = $region49
    $region48: #{tpu_custom_call.1} parent=1 // pred_region
      %1709 = vsyncadd [#allocation3], 0
      %s1710 = sshll.u32 [#allocation10], 4
      %s1711 = int_to_ptr.vmem [resolvable:$true] %s1710
      %s1712 = sshll.u32 %s7, 4
      %s1713 = int_to_ptr.hbm [resolvable:$true] %s1712
      %1718 = dma.vmem_to_hbm [thread:$0]  %s1711, 384, %s1713, [#allocation3], 128, 128, 8
    $region49: #{tpu_custom_call.1} parent=1 // pred_fallthru
      _
    // Predicated region
    $region50: #{tpu_custom_call.1} parent=1 // pred_check
      _
    $region51: #{tpu_custom_call.1} parent=1 // pred_check_branch
      %1720 = sbr.rel (0) target = $region53
    $region52: #{tpu_custom_call.1} parent=1 // pred_region
      %1722 = dma.done [#allocation3], 384
    $region53: #{tpu_custom_call.1} parent=1 // pred_fallthru
      _
    %1723 = vsyncpa [#allocation3], 1
    %1724 = vsyncpa [#allocation4], 1
    %1725 = vsyncpa [#allocation6], 1
    %1726 = vsyncpa [#allocation9], 1

</llo_original>
